<compile_context>
chip_gen: v7x
topology: tpu7x:2x2x1
jax: 0.10.0
libtpu: 0.0.40
codegen_flags: <defaults>
</compile_context>

<pallas_src>
import numpy as np
import jax
import jax.numpy as jnp
from jax.experimental import pallas as pl
from jax.experimental.pallas import tpu as pltpu  # noqa: F401  (TPU backend assumed)

# ----------------------------- model config (small) -----------------------------
NUM_NODES = 16
RNN_UNITS = 32
OUTPUT_DIM = 1
NUM_RNN_LAYERS = 2                 # kernel specialized to the config default (2)
MAX_DIFFUSION_STEP = 2
BATCH = 2
NUM_MATRICES = MAX_DIFFUSION_STEP + 1   # one support (scaled laplacian)

LANES = 128
F0 = OUTPUT_DIM + RNN_UNITS            # 33: layer-0 [x | h0] feature width
F0P = ((F0 + 7) // 8) * 8              # 40: padded to a sublane multiple

# ---- layer-0 weight slab row map (f32, shape (W0_ROWS, 128)) ----
#   rows m*F0P : m*F0P+F0 , cols 0:96   -> [W_fn0[m] | x-row of W_c0[m]]
#   rows m*U   : (m+1)*U  , cols 96:128 -> h-rows of W_c0[m]      (candidate path)
#   row  W0_BIAS_ROW      , cols 0:96   -> [b_fn0 | b_c0]
W0_BIAS_ROW = NUM_MATRICES * F0P                       # 120
W0_ROWS = ((W0_BIAS_ROW + 8) // 8) * 8                 # 128

# ---- layer-1 weight slab row map (f32, shape (W1_ROWS, 128)) ----
#   rows m*U : (m+1)*U          , cols 0:96   -> x-rows (h0_new) of [W_fn1 | W_c1]
#   rows m*U : (m+1)*U          , cols 96:128 -> h-rows (h1)   of W_c1   (cand path)
#   row  W1_BIAS_ROW            , cols 0:96   -> [b_fn1 | b_c1]
#   rows W1_H1_ROW0+m*U : +U    , cols 0:64   -> h-rows (h1)   of W_fn1  (r/u gates)
#   row  W1_PROJ_ROW            , cols 0:33   -> [w_proj | b_proj]
W1_BIAS_ROW = NUM_MATRICES * RNN_UNITS                 # 96
W1_H1_ROW0 = ((W1_BIAS_ROW + 8) // 8) * 8              # 104
W1_PROJ_ROW = W1_H1_ROW0 + NUM_MATRICES * RNN_UNITS    # 200
W1_ROWS = ((W1_PROJ_ROW + 8) // 8) * 8                 # 208


# --------------------------- graph support (host side) ---------------------------
def calculate_scaled_laplacian_np(adj_mx):
    """S = 2/lambda_max * (I - D^-1/2 A D^-1/2) - I  with A symmetrized."""
    adj = np.maximum(adj_mx, adj_mx.T)
    d = adj.sum(axis=1)
    d_inv_sqrt = np.power(d, -0.5, where=d > 0, out=np.zeros_like(d))
    d_inv_sqrt[np.isinf(d_inv_sqrt)] = 0.0
    n = adj.shape[0]
    lap = np.eye(n) - (d_inv_sqrt[:, None] * adj * d_inv_sqrt[None, :])
    lambda_max = float(np.linalg.eigvalsh(lap).max())
    return ((2.0 / lambda_max) * lap - np.eye(n)).astype(np.float32)


# --------------------------- fused decoder forward kernel ------------------------
def _decoder_kernel(act_ref, s_ref, w0_ref, w1_ref, out_ref):
    O, U, M = OUTPUT_DIM, RNN_UNITS, NUM_MATRICES
    R = act_ref.shape[0]

    s = s_ref[...]                         # (R, R) block-diagonal support
    act = act_ref[...]                     # (R, 128) = [x | h0 | h1 | 0]
    h0 = act[:, O:O + U]                   # (R, U)
    h1 = act[:, O + U:O + 2 * U]           # (R, U)

    def diffuse(v):
        """Chebyshev pieces [T_0 v, T_1 v, ..., T_K v] (list of f32 arrays)."""
        pieces = [v]
        v0 = v
        v1 = jnp.dot(s, v, preferred_element_type=jnp.float32)
        pieces.append(v1)
        for _ in range(2, MAX_DIFFUSION_STEP + 1):
            v2 = 2.0 * jnp.dot(s, v1, preferred_element_type=jnp.float32) - v0
            pieces.append(v2)
            v0, v1 = v1, v2
        return pieces

    def apply_w(pieces, weights):
        """sum_m pieces[m] @ weights[m] -- narrow single-pass MXU pushes, f32 acc."""
        acc = jnp.dot(pieces[0], weights[0], preferred_element_type=jnp.float32)
        for p, w in zip(pieces[1:], weights[1:]):
            acc = acc + jnp.dot(p, w, preferred_element_type=jnp.float32)
        return acc

    # ---- Stage 1: diffuse the whole activation slab once (x, h0 AND h1 pieces
    #      come out of the same two MXU pushes).
    a_pieces = diffuse(act)                               # M x (R, 128)

    # layer-0 gate / candidate-x pre-activation (output width 3U = 96).
    # Activation slice is the padded [x | h0 | (junk h1 lanes)] prefix of width
    # F0P=40; the junk lanes hit zero weight rows by construction.
    w0_ruc = [w0_ref[m * F0P:(m + 1) * F0P, :][:, 0:3 * U] for m in range(M)]
    b0 = w0_ref[W0_BIAS_ROW:W0_BIAS_ROW + 1, :][:, 0:3 * U]
    pre0 = apply_w([p[:, 0:F0P] for p in a_pieces], w0_ruc) + b0

    # layer-1: h1 ("state") contribution to its r/u gates (off the critical path).
    w1_h1 = [w1_ref[W1_H1_ROW0 + m * U:W1_H1_ROW0 + (m + 1) * U, :][:, 0:3 * U]
             for m in range(M)]
    b1 = w1_ref[W1_BIAS_ROW:W1_BIAS_ROW + 1, :][:, 0:3 * U]
    pre1 = apply_w([p[:, O + U:O + 2 * U] for p in a_pieces], w1_h1) + b1

    def gru_tail(pre, h, whc):
        ru = jax.nn.sigmoid(pre[:, 0:2 * U])               # bias_start=1.0 folded in
        r = ru[:, 0:U]
        u = ru[:, U:2 * U]
        c = jnp.tanh(pre[:, 2 * U:3 * U] + apply_w(diffuse(r * h), whc))
        return u * h + (1.0 - u) * c

    # ---- layer 0
    w0_hc = [w0_ref[m * U:(m + 1) * U, :][:, 3 * U:4 * U] for m in range(M)]
    h0_new = gru_tail(pre0, h0, w0_hc)

    # ---- layer 1: only the h0_new-dependent part waited for layer 0.
    w1_bands = [w1_ref[m * U:(m + 1) * U, :] for m in range(M)]
    w1_x = [b[:, 0:3 * U] for b in w1_bands]
    w1_hc = [b[:, 3 * U:4 * U] for b in w1_bands]
    pre1 = pre1 + apply_w(diffuse(h0_new), w1_x)
    h1_new = gru_tail(pre1, h1, w1_hc)

    # ---- output projection (OUTPUT_DIM == 1) on the VPU/XLU: mul + lane reduce.
    prow = w1_ref[W1_PROJ_ROW:W1_PROJ_ROW + 1, :]
    proj = (jnp.sum(h1_new * prow[:, 0:U], axis=-1, keepdims=True)
            + prow[:, U:U + O])

    # ---- single lane-dense (R, 128) output slab: [h0_new | h1_new | proj | 0]
    out_ref[:, 0:U] = h0_new
    out_ref[:, U:2 * U] = h1_new
    out_ref[:, 2 * U:2 * U + O] = proj
    out_ref[:, 2 * U + O:] = jnp.zeros((R, LANES - 2 * U - O), jnp.float32)


@jax.jit
def decoder_model_goal_forward(inputs, hidden_state, support_bd, w0_slab, w1_slab):
    """
    inputs:       (B, num_nodes * output_dim)
    hidden_state: (num_layers, B, num_nodes * rnn_units)
    returns:      (output (B, num_nodes * output_dim),
                   new_hidden (num_layers, B, num_nodes * rnn_units))
    """
    B = inputs.shape[0]
    N, U, O = NUM_NODES, RNN_UNITS, OUTPUT_DIM
    R = B * N
    x = inputs.reshape(R, O)
    h0 = hidden_state[0].reshape(R, U)
    h1 = hidden_state[1].reshape(R, U)
    pad = jnp.zeros((R, LANES - O - 2 * U), jnp.float32)
    act = jnp.concatenate([x, h0, h1, pad], axis=-1)       # (R, 128) lane-dense slab

    out = pl.pallas_call(
        _decoder_kernel,
        out_shape=jax.ShapeDtypeStruct((R, LANES), jnp.float32),
    )(act, support_bd, w0_slab, w1_slab)

    h_new = jnp.stack([out[:, 0:U], out[:, U:2 * U]], axis=0)
    output = out[:, 2 * U:2 * U + O]
    return (output.reshape(B, N * O),
            h_new.reshape(NUM_RNN_LAYERS, B, N * U))


# ------------------------------ deterministic init -------------------------------
def xavier_normal(key, num_mat, in_size, out_dim):
    fan_in = num_mat * in_size
    std = np.sqrt(2.0 / (fan_in + out_dim))
    return jax.random.normal(key, (num_mat, in_size, out_dim), jnp.float32) * std


def init_logical_params(key):
    keys = jax.random.split(key, 2 * NUM_RNN_LAYERS + 2)
    layers = []
    for layer in range(NUM_RNN_LAYERS):
        in_dim = OUTPUT_DIM if layer == 0 else RNN_UNITS
        f = in_dim + RNN_UNITS
        layers.append({
            "w_fn": xavier_normal(keys[2 * layer], NUM_MATRICES, f, 2 * RNN_UNITS),
            "w_c": xavier_normal(keys[2 * layer + 1], NUM_MATRICES, f, RNN_UNITS),
            "b_fn": jnp.full((2 * RNN_UNITS,), 1.0, jnp.float32),   # bias_start=1.0
            "b_c": jnp.zeros((RNN_UNITS,), jnp.float32),            # bias_start=0.0
        })
    bound = 1.0 / np.sqrt(RNN_UNITS)
    w_proj = jax.random.uniform(keys[-2], (RNN_UNITS,), jnp.float32, -bound, bound)
    b_proj = jax.random.uniform(keys[-1], (OUTPUT_DIM,), jnp.float32, -bound, bound)
    return {"layers": layers, "w_proj": w_proj, "b_proj": b_proj}


def pack_weight_slabs(logical):
    """Host-side packing of the logical DCGRU weights into two lane-dense slabs."""
    U, M, O = RNN_UNITS, NUM_MATRICES, OUTPUT_DIM
    l0, l1 = logical["layers"]
    w_fn0 = np.asarray(l0["w_fn"]); w_c0 = np.asarray(l0["w_c"])
    w_fn1 = np.asarray(l1["w_fn"]); w_c1 = np.asarray(l1["w_c"])

    w0 = np.zeros((W0_ROWS, LANES), np.float32)
    for m in range(M):
        r0 = m * F0P
        w0[r0:r0 + F0, 0:2 * U] = w_fn0[m]                 # r/u gates, [x | h0] rows
        w0[r0:r0 + O, 2 * U:3 * U] = w_c0[m, 0:O, :]       # candidate, x-row only
        w0[m * U:(m + 1) * U, 3 * U:4 * U] = w_c0[m, O:, :]  # candidate, h-rows (rh path)
    w0[W0_BIAS_ROW, 0:2 * U] = np.asarray(l0["b_fn"])
    w0[W0_BIAS_ROW, 2 * U:3 * U] = np.asarray(l0["b_c"])

    w1 = np.zeros((W1_ROWS, LANES), np.float32)
    for m in range(M):
        r0 = m * U
        w1[r0:r0 + U, 0:2 * U] = w_fn1[m, 0:U, :]          # x-rows (h0_new), r/u
        w1[r0:r0 + U, 2 * U:3 * U] = w_c1[m, 0:U, :]       # x-rows (h0_new), candidate
        w1[r0:r0 + U, 3 * U:4 * U] = w_c1[m, U:, :]        # h-rows (h1), candidate (rh)
        w1[W1_H1_ROW0 + r0:W1_H1_ROW0 + r0 + U, 0:2 * U] = w_fn1[m, U:, :]  # h1, r/u
    w1[W1_BIAS_ROW, 0:2 * U] = np.asarray(l1["b_fn"])
    w1[W1_BIAS_ROW, 2 * U:3 * U] = np.asarray(l1["b_c"])
    w1[W1_PROJ_ROW, 0:U] = np.asarray(logical["w_proj"])
    w1[W1_PROJ_ROW, U:U + O] = np.asarray(logical["b_proj"])
    return jnp.asarray(w0), jnp.asarray(w1)


# --------------------------- pure-JAX reference (checking) -----------------------
def _reference_forward(inputs, hidden_state, support_bd, logical):
    HI = jax.lax.Precision.HIGHEST
    B = inputs.shape[0]
    N, U, O = NUM_NODES, RNN_UNITS, OUTPUT_DIM
    R = B * N
    s = support_bd

    def cheb(v):
        pieces = [v]
        v0, v1 = v, jnp.dot(s, v, precision=HI)
        pieces.append(v1)
        for _ in range(2, MAX_DIFFUSION_STEP + 1):
            v2 = 2.0 * jnp.dot(s, v1, precision=HI) - v0
            pieces.append(v2)
            v0, v1 = v1, v2
        return pieces

    def gconv(pieces, w):
        acc = 0.0
        for m in range(NUM_MATRICES):
            acc = acc + jnp.dot(pieces[m], w[m], precision=HI)
        return acc

    x = inputs.reshape(R, O)
    new_h = []
    for layer in range(NUM_RNN_LAYERS):
        p = logical["layers"][layer]
        h = hidden_state[layer].reshape(R, U)
        ru = jax.nn.sigmoid(gconv(cheb(jnp.concatenate([x, h], -1)), p["w_fn"])
                            + p["b_fn"])
        r, u = ru[:, :U], ru[:, U:]
        c = jnp.tanh(gconv(cheb(jnp.concatenate([x, r * h], -1)), p["w_c"])
                     + p["b_c"])
        h_new = u * h + (1.0 - u) * c
        new_h.append(h_new)
        x = h_new
    proj = jnp.dot(x, logical["w_proj"][:, None], precision=HI) + logical["b_proj"]
    return (proj.reshape(B, N * O),
            jnp.stack(new_h).reshape(NUM_RNN_LAYERS, B, N * U))


# -------------------------------------- main -------------------------------------
if __name__ == "__main__":
    root = jax.random.PRNGKey(0)
    k_adj, k_param, k_in, k_h = jax.random.split(root, 4)

    # deterministic synthetic adjacency -> scaled laplacian support (host-side,
    # exactly like the PyTorch module's __init__ preprocessing)
    adj = np.asarray(jax.random.uniform(k_adj, (NUM_NODES, NUM_NODES)),
                     dtype=np.float64)
    adj = adj * (adj > 0.5)                  # sparsify a bit
    np.fill_diagonal(adj, 1.0)               # ensure nonzero degrees
    support = calculate_scaled_laplacian_np(adj)                        # (N, N)
    support_bd = jnp.asarray(
        np.kron(np.eye(BATCH, dtype=np.float32), support), jnp.float32)  # (B*N, B*N)

    logical = init_logical_params(k_param)
    w0_slab, w1_slab = pack_weight_slabs(logical)

    inputs = jax.random.normal(k_in, (BATCH, NUM_NODES * OUTPUT_DIM), jnp.float32)
    hidden_state = jax.random.normal(
        k_h, (NUM_RNN_LAYERS, BATCH, NUM_NODES * RNN_UNITS), jnp.float32)

    output, new_hidden = decoder_model_goal_forward(
        inputs, hidden_state, support_bd, w0_slab, w1_slab)
    jax.block_until_ready((output, new_hidden))

    assert output.shape == (BATCH, NUM_NODES * OUTPUT_DIM)
    assert new_hidden.shape == (NUM_RNN_LAYERS, BATCH, NUM_NODES * RNN_UNITS)

    # correctness check against a Precision.HIGHEST pure-JAX reference.
    # The kernel's matmuls run at default TPU MXU precision (bf16 ingestion),
    # hence the relaxed tolerance (documented, per the perf review).
    ref_out, ref_hidden = _reference_forward(inputs, hidden_state, support_bd,
                                             logical)
    assert np.allclose(np.asarray(output), np.asarray(ref_out),
                       rtol=3e-2, atol=3e-2)
    assert np.allclose(np.asarray(new_hidden), np.asarray(ref_hidden),
                       rtol=3e-2, atol=3e-2)

    print("KERNEL_OK")
</pallas_src>

<mosaic_0001>
module attributes {stable_mosaic.version = 11 : i64} {
  func.func @_decoder_kernel(%arg0: memref<32x128xf32, #tpu.memory_space<vmem>>, %arg1: memref<32x32xf32, #tpu.memory_space<vmem>>, %arg2: memref<128x128xf32, #tpu.memory_space<vmem>>, %arg3: memref<208x128xf32, #tpu.memory_space<vmem>>, %arg4: memref<32x128xf32, #tpu.memory_space<vmem>>) attributes {dimension_semantics = [], scalar_prefetch = 0 : i64, scratch_operands = 0 : i64, tpu.core_type = #tpu.core_type<tc>} {
    %c0 = arith.constant 0 : index
    %c0_0 = arith.constant 0 : index
    %0 = vector.load %arg1[%c0, %c0_0] : memref<32x32xf32, #tpu.memory_space<vmem>>, vector<32x32xf32>
    %c0_1 = arith.constant 0 : index
    %c0_2 = arith.constant 0 : index
    %1 = vector.load %arg0[%c0_1, %c0_2] : memref<32x128xf32, #tpu.memory_space<vmem>>, vector<32x128xf32>
    %2 = vector.extract_strided_slice %1 {offsets = [0, 1], sizes = [32, 32], strides = [1, 1]} : vector<32x128xf32> to vector<32x32xf32>
    %3 = vector.extract_strided_slice %1 {offsets = [0, 33], sizes = [32, 32], strides = [1, 1]} : vector<32x128xf32> to vector<32x32xf32>
    %cst = arith.constant dense<0.000000e+00> : vector<32x128xf32>
    %4 = tpu.matmul %0, %1, %cst {dimension_numbers = #tpu.dot_dimension_numbers<[1], [0], [0], [1], [0, 0, 1, 1], [], []>} : vector<32x32xf32>, vector<32x128xf32>, vector<32x128xf32> -> vector<32x128xf32>
    %cst_3 = arith.constant dense<0.000000e+00> : vector<32x128xf32>
    %5 = tpu.matmul %0, %4, %cst_3 {dimension_numbers = #tpu.dot_dimension_numbers<[1], [0], [0], [1], [0, 0, 1, 1], [], []>} : vector<32x32xf32>, vector<32x128xf32>, vector<32x128xf32> -> vector<32x128xf32>
    %cst_4 = arith.constant 2.000000e+00 : f32
    %6 = vector.broadcast %cst_4 : f32 to vector<32x128xf32>
    %7 = arith.mulf %6, %5 : vector<32x128xf32>
    %8 = arith.subf %7, %1 : vector<32x128xf32>
    %c0_5 = arith.constant 0 : index
    %c0_6 = arith.constant 0 : index
    %9 = vector.load %arg2[%c0_5, %c0_6] : memref<128x128xf32, #tpu.memory_space<vmem>>, vector<40x128xf32>
    %10 = vector.extract_strided_slice %9 {offsets = [0, 0], sizes = [40, 96], strides = [1, 1]} : vector<40x128xf32> to vector<40x96xf32>
    %c40 = arith.constant 40 : index
    %c0_7 = arith.constant 0 : index
    %11 = vector.load %arg2[%c40, %c0_7] : memref<128x128xf32, #tpu.memory_space<vmem>>, vector<40x128xf32>
    %12 = vector.extract_strided_slice %11 {offsets = [0, 0], sizes = [40, 96], strides = [1, 1]} : vector<40x128xf32> to vector<40x96xf32>
    %c80 = arith.constant 80 : index
    %c0_8 = arith.constant 0 : index
    %13 = vector.load %arg2[%c80, %c0_8] : memref<128x128xf32, #tpu.memory_space<vmem>>, vector<40x128xf32>
    %14 = vector.extract_strided_slice %13 {offsets = [0, 0], sizes = [40, 96], strides = [1, 1]} : vector<40x128xf32> to vector<40x96xf32>
    %c120 = arith.constant 120 : index
    %c0_9 = arith.constant 0 : index
    %15 = vector.load %arg2[%c120, %c0_9] : memref<128x128xf32, #tpu.memory_space<vmem>>, vector<1x128xf32>
    %16 = vector.extract_strided_slice %15 {offsets = [0, 0], sizes = [1, 96], strides = [1, 1]} : vector<1x128xf32> to vector<1x96xf32>
    %17 = vector.extract_strided_slice %1 {offsets = [0, 0], sizes = [32, 40], strides = [1, 1]} : vector<32x128xf32> to vector<32x40xf32>
    %18 = vector.extract_strided_slice %4 {offsets = [0, 0], sizes = [32, 40], strides = [1, 1]} : vector<32x128xf32> to vector<32x40xf32>
    %19 = vector.extract_strided_slice %8 {offsets = [0, 0], sizes = [32, 40], strides = [1, 1]} : vector<32x128xf32> to vector<32x40xf32>
    %cst_10 = arith.constant dense<0.000000e+00> : vector<32x96xf32>
    %20 = tpu.matmul %17, %10, %cst_10 {dimension_numbers = #tpu.dot_dimension_numbers<[1], [0], [0], [1], [0, 0, 1, 1], [], []>} : vector<32x40xf32>, vector<40x96xf32>, vector<32x96xf32> -> vector<32x96xf32>
    %cst_11 = arith.constant dense<0.000000e+00> : vector<32x96xf32>
    %21 = tpu.matmul %18, %12, %cst_11 {dimension_numbers = #tpu.dot_dimension_numbers<[1], [0], [0], [1], [0, 0, 1, 1], [], []>} : vector<32x40xf32>, vector<40x96xf32>, vector<32x96xf32> -> vector<32x96xf32>
    %22 = arith.addf %20, %21 : vector<32x96xf32>
    %cst_12 = arith.constant dense<0.000000e+00> : vector<32x96xf32>
    %23 = tpu.matmul %19, %14, %cst_12 {dimension_numbers = #tpu.dot_dimension_numbers<[1], [0], [0], [1], [0, 0, 1, 1], [], []>} : vector<32x40xf32>, vector<40x96xf32>, vector<32x96xf32> -> vector<32x96xf32>
    %24 = arith.addf %22, %23 : vector<32x96xf32>
    %25 = vector.broadcast %16 : vector<1x96xf32> to vector<32x96xf32>
    %26 = arith.addf %24, %25 : vector<32x96xf32>
    %c104 = arith.constant 104 : index
    %c0_13 = arith.constant 0 : index
    %27 = vector.load %arg3[%c104, %c0_13] : memref<208x128xf32, #tpu.memory_space<vmem>>, vector<32x128xf32>
    %28 = vector.extract_strided_slice %27 {offsets = [0, 0], sizes = [32, 96], strides = [1, 1]} : vector<32x128xf32> to vector<32x96xf32>
    %c136 = arith.constant 136 : index
    %c0_14 = arith.constant 0 : index
    %29 = vector.load %arg3[%c136, %c0_14] : memref<208x128xf32, #tpu.memory_space<vmem>>, vector<32x128xf32>
    %30 = vector.extract_strided_slice %29 {offsets = [0, 0], sizes = [32, 96], strides = [1, 1]} : vector<32x128xf32> to vector<32x96xf32>
    %c168 = arith.constant 168 : index
    %c0_15 = arith.constant 0 : index
    %31 = vector.load %arg3[%c168, %c0_15] : memref<208x128xf32, #tpu.memory_space<vmem>>, vector<32x128xf32>
    %32 = vector.extract_strided_slice %31 {offsets = [0, 0], sizes = [32, 96], strides = [1, 1]} : vector<32x128xf32> to vector<32x96xf32>
    %c96 = arith.constant 96 : index
    %c0_16 = arith.constant 0 : index
    %33 = vector.load %arg3[%c96, %c0_16] : memref<208x128xf32, #tpu.memory_space<vmem>>, vector<1x128xf32>
    %34 = vector.extract_strided_slice %33 {offsets = [0, 0], sizes = [1, 96], strides = [1, 1]} : vector<1x128xf32> to vector<1x96xf32>
    %35 = vector.extract_strided_slice %1 {offsets = [0, 33], sizes = [32, 32], strides = [1, 1]} : vector<32x128xf32> to vector<32x32xf32>
    %36 = vector.extract_strided_slice %4 {offsets = [0, 33], sizes = [32, 32], strides = [1, 1]} : vector<32x128xf32> to vector<32x32xf32>
    %37 = vector.extract_strided_slice %8 {offsets = [0, 33], sizes = [32, 32], strides = [1, 1]} : vector<32x128xf32> to vector<32x32xf32>
    %cst_17 = arith.constant dense<0.000000e+00> : vector<32x96xf32>
    %38 = tpu.matmul %35, %28, %cst_17 {dimension_numbers = #tpu.dot_dimension_numbers<[1], [0], [0], [1], [0, 0, 1, 1], [], []>} : vector<32x32xf32>, vector<32x96xf32>, vector<32x96xf32> -> vector<32x96xf32>
    %cst_18 = arith.constant dense<0.000000e+00> : vector<32x96xf32>
    %39 = tpu.matmul %36, %30, %cst_18 {dimension_numbers = #tpu.dot_dimension_numbers<[1], [0], [0], [1], [0, 0, 1, 1], [], []>} : vector<32x32xf32>, vector<32x96xf32>, vector<32x96xf32> -> vector<32x96xf32>
    %40 = arith.addf %38, %39 : vector<32x96xf32>
    %cst_19 = arith.constant dense<0.000000e+00> : vector<32x96xf32>
    %41 = tpu.matmul %37, %32, %cst_19 {dimension_numbers = #tpu.dot_dimension_numbers<[1], [0], [0], [1], [0, 0, 1, 1], [], []>} : vector<32x32xf32>, vector<32x96xf32>, vector<32x96xf32> -> vector<32x96xf32>
    %42 = arith.addf %40, %41 : vector<32x96xf32>
    %43 = vector.broadcast %34 : vector<1x96xf32> to vector<32x96xf32>
    %44 = arith.addf %42, %43 : vector<32x96xf32>
    %c0_20 = arith.constant 0 : index
    %c0_21 = arith.constant 0 : index
    %45 = vector.load %arg2[%c0_20, %c0_21] : memref<128x128xf32, #tpu.memory_space<vmem>>, vector<32x128xf32>
    %46 = vector.extract_strided_slice %45 {offsets = [0, 96], sizes = [32, 32], strides = [1, 1]} : vector<32x128xf32> to vector<32x32xf32>
    %c32 = arith.constant 32 : index
    %c0_22 = arith.constant 0 : index
    %47 = vector.load %arg2[%c32, %c0_22] : memref<128x128xf32, #tpu.memory_space<vmem>>, vector<32x128xf32>
    %48 = vector.extract_strided_slice %47 {offsets = [0, 96], sizes = [32, 32], strides = [1, 1]} : vector<32x128xf32> to vector<32x32xf32>
    %c64 = arith.constant 64 : index
    %c0_23 = arith.constant 0 : index
    %49 = vector.load %arg2[%c64, %c0_23] : memref<128x128xf32, #tpu.memory_space<vmem>>, vector<32x128xf32>
    %50 = vector.extract_strided_slice %49 {offsets = [0, 96], sizes = [32, 32], strides = [1, 1]} : vector<32x128xf32> to vector<32x32xf32>
    %51 = vector.extract_strided_slice %26 {offsets = [0, 0], sizes = [32, 64], strides = [1, 1]} : vector<32x96xf32> to vector<32x64xf32>
    %52 = arith.negf %51 : vector<32x64xf32>
    %53 = math.exp %52 : vector<32x64xf32>
    %cst_24 = arith.constant 1.000000e+00 : f32
    %54 = vector.broadcast %cst_24 : f32 to vector<32x64xf32>
    %55 = arith.addf %54, %53 : vector<32x64xf32>
    %56 = arith.divf %54, %55 : vector<32x64xf32>
    %57 = vector.extract_strided_slice %56 {offsets = [0, 0], sizes = [32, 32], strides = [1, 1]} : vector<32x64xf32> to vector<32x32xf32>
    %58 = vector.extract_strided_slice %56 {offsets = [0, 32], sizes = [32, 32], strides = [1, 1]} : vector<32x64xf32> to vector<32x32xf32>
    %59 = vector.extract_strided_slice %26 {offsets = [0, 64], sizes = [32, 32], strides = [1, 1]} : vector<32x96xf32> to vector<32x32xf32>
    %60 = arith.mulf %57, %2 : vector<32x32xf32>
    %cst_25 = arith.constant dense<0.000000e+00> : vector<32x32xf32>
    %61 = tpu.matmul %0, %60, %cst_25 {dimension_numbers = #tpu.dot_dimension_numbers<[1], [0], [0], [1], [0, 0, 1, 1], [], []>} : vector<32x32xf32>, vector<32x32xf32>, vector<32x32xf32> -> vector<32x32xf32>
    %cst_26 = arith.constant dense<0.000000e+00> : vector<32x32xf32>
    %62 = tpu.matmul %0, %61, %cst_26 {dimension_numbers = #tpu.dot_dimension_numbers<[1], [0], [0], [1], [0, 0, 1, 1], [], []>} : vector<32x32xf32>, vector<32x32xf32>, vector<32x32xf32> -> vector<32x32xf32>
    %cst_27 = arith.constant 2.000000e+00 : f32
    %63 = vector.broadcast %cst_27 : f32 to vector<32x32xf32>
    %64 = arith.mulf %63, %62 : vector<32x32xf32>
    %65 = arith.subf %64, %60 : vector<32x32xf32>
    %cst_28 = arith.constant dense<0.000000e+00> : vector<32x32xf32>
    %66 = tpu.matmul %60, %46, %cst_28 {dimension_numbers = #tpu.dot_dimension_numbers<[1], [0], [0], [1], [0, 0, 1, 1], [], []>} : vector<32x32xf32>, vector<32x32xf32>, vector<32x32xf32> -> vector<32x32xf32>
    %cst_29 = arith.constant dense<0.000000e+00> : vector<32x32xf32>
    %67 = tpu.matmul %61, %48, %cst_29 {dimension_numbers = #tpu.dot_dimension_numbers<[1], [0], [0], [1], [0, 0, 1, 1], [], []>} : vector<32x32xf32>, vector<32x32xf32>, vector<32x32xf32> -> vector<32x32xf32>
    %68 = arith.addf %66, %67 : vector<32x32xf32>
    %cst_30 = arith.constant dense<0.000000e+00> : vector<32x32xf32>
    %69 = tpu.matmul %65, %50, %cst_30 {dimension_numbers = #tpu.dot_dimension_numbers<[1], [0], [0], [1], [0, 0, 1, 1], [], []>} : vector<32x32xf32>, vector<32x32xf32>, vector<32x32xf32> -> vector<32x32xf32>
    %70 = arith.addf %68, %69 : vector<32x32xf32>
    %71 = arith.addf %59, %70 : vector<32x32xf32>
    %72 = math.tanh %71 : vector<32x32xf32>
    %73 = arith.mulf %58, %2 : vector<32x32xf32>
    %cst_31 = arith.constant 1.000000e+00 : f32
    %74 = vector.broadcast %cst_31 : f32 to vector<32x32xf32>
    %75 = arith.subf %74, %58 : vector<32x32xf32>
    %76 = arith.mulf %75, %72 : vector<32x32xf32>
    %77 = arith.addf %73, %76 : vector<32x32xf32>
    %c0_32 = arith.constant 0 : index
    %c0_33 = arith.constant 0 : index
    %78 = vector.load %arg3[%c0_32, %c0_33] : memref<208x128xf32, #tpu.memory_space<vmem>>, vector<32x128xf32>
    %c32_34 = arith.constant 32 : index
    %c0_35 = arith.constant 0 : index
    %79 = vector.load %arg3[%c32_34, %c0_35] : memref<208x128xf32, #tpu.memory_space<vmem>>, vector<32x128xf32>
    %c64_36 = arith.constant 64 : index
    %c0_37 = arith.constant 0 : index
    %80 = vector.load %arg3[%c64_36, %c0_37] : memref<208x128xf32, #tpu.memory_space<vmem>>, vector<32x128xf32>
    %81 = vector.extract_strided_slice %78 {offsets = [0, 0], sizes = [32, 96], strides = [1, 1]} : vector<32x128xf32> to vector<32x96xf32>
    %82 = vector.extract_strided_slice %79 {offsets = [0, 0], sizes = [32, 96], strides = [1, 1]} : vector<32x128xf32> to vector<32x96xf32>
    %83 = vector.extract_strided_slice %80 {offsets = [0, 0], sizes = [32, 96], strides = [1, 1]} : vector<32x128xf32> to vector<32x96xf32>
    %84 = vector.extract_strided_slice %78 {offsets = [0, 96], sizes = [32, 32], strides = [1, 1]} : vector<32x128xf32> to vector<32x32xf32>
    %85 = vector.extract_strided_slice %79 {offsets = [0, 96], sizes = [32, 32], strides = [1, 1]} : vector<32x128xf32> to vector<32x32xf32>
    %86 = vector.extract_strided_slice %80 {offsets = [0, 96], sizes = [32, 32], strides = [1, 1]} : vector<32x128xf32> to vector<32x32xf32>
    %cst_38 = arith.constant dense<0.000000e+00> : vector<32x32xf32>
    %87 = tpu.matmul %0, %77, %cst_38 {dimension_numbers = #tpu.dot_dimension_numbers<[1], [0], [0], [1], [0, 0, 1, 1], [], []>} : vector<32x32xf32>, vector<32x32xf32>, vector<32x32xf32> -> vector<32x32xf32>
    %cst_39 = arith.constant dense<0.000000e+00> : vector<32x32xf32>
    %88 = tpu.matmul %0, %87, %cst_39 {dimension_numbers = #tpu.dot_dimension_numbers<[1], [0], [0], [1], [0, 0, 1, 1], [], []>} : vector<32x32xf32>, vector<32x32xf32>, vector<32x32xf32> -> vector<32x32xf32>
    %cst_40 = arith.constant 2.000000e+00 : f32
    %89 = vector.broadcast %cst_40 : f32 to vector<32x32xf32>
    %90 = arith.mulf %89, %88 : vector<32x32xf32>
    %91 = arith.subf %90, %77 : vector<32x32xf32>
    %cst_41 = arith.constant dense<0.000000e+00> : vector<32x96xf32>
    %92 = tpu.matmul %77, %81, %cst_41 {dimension_numbers = #tpu.dot_dimension_numbers<[1], [0], [0], [1], [0, 0, 1, 1], [], []>} : vector<32x32xf32>, vector<32x96xf32>, vector<32x96xf32> -> vector<32x96xf32>
    %cst_42 = arith.constant dense<0.000000e+00> : vector<32x96xf32>
    %93 = tpu.matmul %87, %82, %cst_42 {dimension_numbers = #tpu.dot_dimension_numbers<[1], [0], [0], [1], [0, 0, 1, 1], [], []>} : vector<32x32xf32>, vector<32x96xf32>, vector<32x96xf32> -> vector<32x96xf32>
    %94 = arith.addf %92, %93 : vector<32x96xf32>
    %cst_43 = arith.constant dense<0.000000e+00> : vector<32x96xf32>
    %95 = tpu.matmul %91, %83, %cst_43 {dimension_numbers = #tpu.dot_dimension_numbers<[1], [0], [0], [1], [0, 0, 1, 1], [], []>} : vector<32x32xf32>, vector<32x96xf32>, vector<32x96xf32> -> vector<32x96xf32>
    %96 = arith.addf %94, %95 : vector<32x96xf32>
    %97 = arith.addf %44, %96 : vector<32x96xf32>
    %98 = vector.extract_strided_slice %97 {offsets = [0, 0], sizes = [32, 64], strides = [1, 1]} : vector<32x96xf32> to vector<32x64xf32>
    %99 = arith.negf %98 : vector<32x64xf32>
    %100 = math.exp %99 : vector<32x64xf32>
    %cst_44 = arith.constant 1.000000e+00 : f32
    %101 = vector.broadcast %cst_44 : f32 to vector<32x64xf32>
    %102 = arith.addf %101, %100 : vector<32x64xf32>
    %103 = arith.divf %101, %102 : vector<32x64xf32>
    %104 = vector.extract_strided_slice %103 {offsets = [0, 0], sizes = [32, 32], strides = [1, 1]} : vector<32x64xf32> to vector<32x32xf32>
    %105 = vector.extract_strided_slice %103 {offsets = [0, 32], sizes = [32, 32], strides = [1, 1]} : vector<32x64xf32> to vector<32x32xf32>
    %106 = vector.extract_strided_slice %97 {offsets = [0, 64], sizes = [32, 32], strides = [1, 1]} : vector<32x96xf32> to vector<32x32xf32>
    %107 = arith.mulf %104, %3 : vector<32x32xf32>
    %cst_45 = arith.constant dense<0.000000e+00> : vector<32x32xf32>
    %108 = tpu.matmul %0, %107, %cst_45 {dimension_numbers = #tpu.dot_dimension_numbers<[1], [0], [0], [1], [0, 0, 1, 1], [], []>} : vector<32x32xf32>, vector<32x32xf32>, vector<32x32xf32> -> vector<32x32xf32>
    %cst_46 = arith.constant dense<0.000000e+00> : vector<32x32xf32>
    %109 = tpu.matmul %0, %108, %cst_46 {dimension_numbers = #tpu.dot_dimension_numbers<[1], [0], [0], [1], [0, 0, 1, 1], [], []>} : vector<32x32xf32>, vector<32x32xf32>, vector<32x32xf32> -> vector<32x32xf32>
    %cst_47 = arith.constant 2.000000e+00 : f32
    %110 = vector.broadcast %cst_47 : f32 to vector<32x32xf32>
    %111 = arith.mulf %110, %109 : vector<32x32xf32>
    %112 = arith.subf %111, %107 : vector<32x32xf32>
    %cst_48 = arith.constant dense<0.000000e+00> : vector<32x32xf32>
    %113 = tpu.matmul %107, %84, %cst_48 {dimension_numbers = #tpu.dot_dimension_numbers<[1], [0], [0], [1], [0, 0, 1, 1], [], []>} : vector<32x32xf32>, vector<32x32xf32>, vector<32x32xf32> -> vector<32x32xf32>
    %cst_49 = arith.constant dense<0.000000e+00> : vector<32x32xf32>
    %114 = tpu.matmul %108, %85, %cst_49 {dimension_numbers = #tpu.dot_dimension_numbers<[1], [0], [0], [1], [0, 0, 1, 1], [], []>} : vector<32x32xf32>, vector<32x32xf32>, vector<32x32xf32> -> vector<32x32xf32>
    %115 = arith.addf %113, %114 : vector<32x32xf32>
    %cst_50 = arith.constant dense<0.000000e+00> : vector<32x32xf32>
    %116 = tpu.matmul %112, %86, %cst_50 {dimension_numbers = #tpu.dot_dimension_numbers<[1], [0], [0], [1], [0, 0, 1, 1], [], []>} : vector<32x32xf32>, vector<32x32xf32>, vector<32x32xf32> -> vector<32x32xf32>
    %117 = arith.addf %115, %116 : vector<32x32xf32>
    %118 = arith.addf %106, %117 : vector<32x32xf32>
    %119 = math.tanh %118 : vector<32x32xf32>
    %120 = arith.mulf %105, %3 : vector<32x32xf32>
    %cst_51 = arith.constant 1.000000e+00 : f32
    %121 = vector.broadcast %cst_51 : f32 to vector<32x32xf32>
    %122 = arith.subf %121, %105 : vector<32x32xf32>
    %123 = arith.mulf %122, %119 : vector<32x32xf32>
    %124 = arith.addf %120, %123 : vector<32x32xf32>
    %c200 = arith.constant 200 : index
    %c0_52 = arith.constant 0 : index
    %125 = vector.load %arg3[%c200, %c0_52] : memref<208x128xf32, #tpu.memory_space<vmem>>, vector<1x128xf32>
    %126 = vector.extract_strided_slice %125 {offsets = [0, 0], sizes = [1, 32], strides = [1, 1]} : vector<1x128xf32> to vector<1x32xf32>
    %127 = vector.broadcast %126 : vector<1x32xf32> to vector<32x32xf32>
    %128 = arith.mulf %124, %127 : vector<32x32xf32>
    %cst_53 = arith.constant dense<0.000000e+00> : vector<32xf32>
    %129 = vector.multi_reduction <add>, %128, %cst_53 [1] : vector<32x32xf32> to vector<32xf32>
    %130 = vector.shape_cast %129 : vector<32xf32> to vector<32x1xf32>
    %131 = vector.extract_strided_slice %125 {offsets = [0, 32], sizes = [1, 1], strides = [1, 1]} : vector<1x128xf32> to vector<1x1xf32>
    %132 = vector.broadcast %131 : vector<1x1xf32> to vector<32x1xf32>
    %133 = arith.addf %130, %132 : vector<32x1xf32>
    %c0_54 = arith.constant 0 : index
    %c0_55 = arith.constant 0 : index
    %134 = vector.load %arg4[%c0_54, %c0_55] : memref<32x128xf32, #tpu.memory_space<vmem>>, vector<32x32xf32>
    tpu.vector_store %arg4[%c0_54, %c0_55], %77 {strides = array<i32>} : memref<32x128xf32, #tpu.memory_space<vmem>>, vector<32x32xf32>,
    %c0_56 = arith.constant 0 : index
    %c32_57 = arith.constant 32 : index
    %135 = vector.load %arg4[%c0_56, %c32_57] : memref<32x128xf32, #tpu.memory_space<vmem>>, vector<32x32xf32>
    tpu.vector_store %arg4[%c0_56, %c32_57], %124 {strides = array<i32>} : memref<32x128xf32, #tpu.memory_space<vmem>>, vector<32x32xf32>,
    %c0_58 = arith.constant 0 : index
    %c64_59 = arith.constant 64 : index
    %136 = vector.load %arg4[%c0_58, %c64_59] : memref<32x128xf32, #tpu.memory_space<vmem>>, vector<32x1xf32>
    tpu.vector_store %arg4[%c0_58, %c64_59], %133 {strides = array<i32>} : memref<32x128xf32, #tpu.memory_space<vmem>>, vector<32x1xf32>,
    %cst_60 = arith.constant 0.000000e+00 : f32
    %137 = vector.broadcast %cst_60 : f32 to vector<32x63xf32>
    %c0_61 = arith.constant 0 : index
    %c65 = arith.constant 65 : index
    %138 = vector.load %arg4[%c0_61, %c65] : memref<32x128xf32, #tpu.memory_space<vmem>>, vector<32x63xf32>
    tpu.vector_store %arg4[%c0_61, %c65], %137 {strides = array<i32>} : memref<32x128xf32, #tpu.memory_space<vmem>>, vector<32x63xf32>,
    return
  }
}

</mosaic_0001>

<llo_original>
// kernel: squeeze.2
$region0: #{squeeze.2}
  %s0 = inlined_call_operand.vmem [shape: f32[1,2,512], index: 0, kind: input, shape index: {}]
  %s1 = inlined_call_operand.vmem [shape: f32[32,32], index: 1, kind: output, shape index: {}]
  $region1: #{squeeze.2} parent=0
    #allocation0 [shape = 'u8[16384]{0}', space=vmem, size = 0x4000, scoped, tag = 'scoped mem for input reshape']
    %s3 = sshllo.u32 0, 2
    %s4 = smul.addr 2, 3
    %s5 = scalar_lea.vmem %s0, %s4
    %v6 = vld [vmem:[%s5] sm:%s3]
    %s7 = scalar_lea.vmem [#allocation0], 24
    %8 = vst [vmem:[%s7] sm:%s3] %v6
    %s9 = smul.addr 2, 2
    %s10 = scalar_lea.vmem %s0, %s9
    %v11 = vld [vmem:[%s10] sm:%s3]
    %s12 = scalar_lea.vmem [#allocation0], 16
    %13 = vst [vmem:[%s12] sm:%s3] %v11
    %s14 = scalar_lea.vmem %s0, 2
    %v15 = vld [vmem:[%s14] sm:%s3]
    %s16 = scalar_lea.vmem [#allocation0], 8
    %17 = vst [vmem:[%s16] sm:%s3] %v15
    %v18 = vld [vmem:[%s0] sm:%s3]
    %19 = vst [vmem:[#allocation0] sm:%s3] %v18
    %v20 = vld [vmem:[#allocation0] sm:$0x3]
    %vm21 = vcmask 261120
    %22 = vst.msk [vmem:[%s1] ss:$16 sm:$0x3] %vm21, %v20
    %s23 = scalar_lea.vmem [#allocation0], 8
    %v24 = vld [vmem:[%s23] sm:$0x3]
    %vm25 = vcmask 261120
    %s26 = scalar_lea.vmem %s1, 4
    %27 = vst.msk [vmem:[%s26] ss:$16 sm:$0x3] %vm25, %v24
    %s28 = scalar_lea.vmem [#allocation0], 16
    %v29 = vld [vmem:[%s28] sm:$0x3]
    %vm30 = vcmask 261120
    %s31 = scalar_lea.vmem %s1, 8
    %32 = vst.msk [vmem:[%s31] ss:$16 sm:$0x3] %vm30, %v29
    %s33 = scalar_lea.vmem [#allocation0], 24
    %v34 = vld [vmem:[%s33] sm:$0x3]
    %vm35 = vcmask 261120
    %s36 = scalar_lea.vmem %s1, 12
    %37 = vst.msk [vmem:[%s36] ss:$16 sm:$0x3] %vm35, %v34
    %v38 = vld [vmem:[#allocation0] ss:$8 sm:$0xf]
    %s39 = scalar_lea.vmem [#allocation0], 4294967265
    %v40 = vld [vmem:[%s39] ss:$8 sm:$0xf0]
    %vm41 = vcmask 1047556
    %v42 = vsel %vm41, %v40, %v38
    %43 = vrot.lane.b32.xlu0 %v42, 96
    %v44 = vpop.permute.xlu0 %43
    %vm45 = vcmask 261120
    %s46 = scalar_lea.vmem %s1, 1
    %47 = vst.msk [vmem:[%s46] ss:$4 sm:$0xff] %vm45, %v44
    %v48 = vld [vmem:[#allocation0] ss:$8 sm:$0xf]
    %s49 = scalar_lea.vmem [#allocation0], 4294967265
    %v50 = vld [vmem:[%s49] ss:$8 sm:$0xf0]
    %vm51 = vcmask 1047556
    %v52 = vsel %vm51, %v50, %v48
    %53 = vrot.lane.b32.xlu0 %v52, 64
    %v54 = vpop.permute.xlu0 %53
    %vm55 = vcmask 261120
    %s56 = scalar_lea.vmem %s1, 2
    %57 = vst.msk [vmem:[%s56] ss:$4 sm:$0xff] %vm55, %v54
    %v58 = vld [vmem:[#allocation0] ss:$8 sm:$0xf]
    %s59 = scalar_lea.vmem [#allocation0], 4294967265
    %v60 = vld [vmem:[%s59] ss:$8 sm:$0xf0]
    %vm61 = vcmask 1047556
    %v62 = vsel %vm61, %v60, %v58
    %63 = vrot.lane.b32.xlu0 %v62, 32
    %v64 = vpop.permute.xlu0 %63
    %vm65 = vcmask 261120
    %s66 = scalar_lea.vmem %s1, 3
    %67 = vst.msk [vmem:[%s66] ss:$4 sm:$0xff] %vm65, %v64

// kernel: decoder_model_goal_forward.1
$region0: #{decoder_model_goal_forward.1}
  #allocation0 [shape = 'u32[]', space=smem, size = 0x4, offset = 0x4, fixed_abs, tag = 'smem constant byte address 0x4 - core index']
  #allocation1 [shape = 'u32[144,128]{1,0:T(1,128)}', space=vmem, size = 0x12000, scoped, tag = 'internal scratch']
  %s0 = inlined_call_operand.vmem [shape: f32[32,128], index: 0, kind: input, shape index: {}]
  %s1 = inlined_call_operand.vmem [shape: f32[32,32], index: 1, kind: input, shape index: {}]
  %s2 = inlined_call_operand.hbm [shape: f32[128,128], index: 2, kind: input, shape index: {}]
  %s3 = inlined_call_operand.vmem [shape: f32[208,128], index: 3, kind: input, shape index: {}]
  %s4 = inlined_call_operand.vmem [shape: f32[32,128], index: 4, kind: output, shape index: {}]
  %s5 = sld [smem:[#allocation0]]
  $region30: #{decoder_model_goal_forward.1} parent=0
    _
  %s7 = ssub.s32 1, %s5
  %s8 = scalar_select 0, %s7, %s5
  $region1: #{decoder_model_goal_forward.1} parent=0
    #allocation2 [shape = 'u8[65536]{0}', space=vmem, size = 0x10000, scoped, tag = 'input window, operand 2, single buffered']
    #allocation3 [shape = 's32[1]{0}', space=sflag, size = 0x4, scoped, tag = 'scoped memory for decoder_model_goal_forward.1']
    %9 = vsyncpa [#allocation3], 0
    // Predicated region
    $region2: #{decoder_model_goal_forward.1} parent=1 // pred_check
      _
    $region3: #{decoder_model_goal_forward.1} parent=1 // pred_check_branch
      %11 = sbr.rel (0) target = $region5
    $region4: #{decoder_model_goal_forward.1} parent=1 // pred_region
      _
    $region5: #{decoder_model_goal_forward.1} parent=1 // pred_fallthru
      _
    // Predicated region
    $region6: #{decoder_model_goal_forward.1} parent=1 // pred_check
      _
    $region7: #{decoder_model_goal_forward.1} parent=1 // pred_check_branch
      %13 = sbr.rel (0) target = $region9
    $region8: #{decoder_model_goal_forward.1} parent=1 // pred_region
      _
    $region9: #{decoder_model_goal_forward.1} parent=1 // pred_fallthru
      _
    // Predicated region
    $region10: #{decoder_model_goal_forward.1} parent=1 // pred_check
      _
    $region11: #{decoder_model_goal_forward.1} parent=1 // pred_check_branch
      %15 = sbr.rel (0) target = $region13
    $region12: #{decoder_model_goal_forward.1} parent=1 // pred_region
      %s17 = ssub.s32 2048, 2048
      %18 = vsyncadd [#allocation3], %s17
      %s19 = sshll.u32 [#allocation2], 4
      %s20 = int_to_ptr.vmem [resolvable:$true] %s19
      %25 = dma.hbm_to_vmem [thread:$0]  %s2, 2048, %s20, [#allocation3], 128, 128, 8
    $region13: #{decoder_model_goal_forward.1} parent=1 // pred_fallthru
      _
    // Predicated region
    $region14: #{decoder_model_goal_forward.1} parent=1 // pred_check
      _
    $region15: #{decoder_model_goal_forward.1} parent=1 // pred_check_branch
      %27 = sbr.rel (0) target = $region17
    $region16: #{decoder_model_goal_forward.1} parent=1 // pred_region
      _
    $region17: #{decoder_model_goal_forward.1} parent=1 // pred_fallthru
      _
    // Predicated region
    $region18: #{decoder_model_goal_forward.1} parent=1 // pred_check
      _
    $region19: #{decoder_model_goal_forward.1} parent=1 // pred_check_branch
      %29 = sbr.rel (0) target = $region21
    $region20: #{decoder_model_goal_forward.1} parent=1 // pred_region
      %30 = dma.done [#allocation3], 2048
    $region21: #{decoder_model_goal_forward.1} parent=1 // pred_fallthru
      _
    %v31 = vld [vmem:[%s1] sm:$0xff]
    %v32 = vld [vmem:[%s1 + $0x8] sm:$0xff]
    %v33 = vld [vmem:[%s1 + $0x10] sm:$0xff]
    %v34 = vld [vmem:[%s1 + $0x18] sm:$0xff]
    %v35 = vld [vmem:[%s0] sm:$0xff]
    %v36 = vld [vmem:[%s0 + $0x8] sm:$0xff]
    %v37 = vld [vmem:[%s0 + $0x10] sm:$0xff]
    %v38 = vld [vmem:[%s0 + $0x18] sm:$0xff]
    %vm39 = vcmask 261120
    %v41 = vsel %vm39, %v31, 0
    %v44 = vsel %vm39, %v32, 0
    %v47 = vsel %vm39, %v33, 0
    %v50 = vsel %vm39, %v34, 0
    %52 = vmatprep.subr.mxu0 0.0
    %53 = vmatpush1.msra.mxu0 %v35
    %54 = vmatprep.subr.mxu0 0.0
    %55 = vmatpush1.msra.mxu0 %v36
    %56 = vmatprep.subr.mxu0 0.0
    %57 = vmatpush1.msra.mxu0 %v37
    %58 = vmatprep.subr.mxu0 0.0
    %59 = vmatpush1.msra.mxu0 %v38
    %60 = vmatprep.subr.mxu0 0.0
    %61 = vmatpush1.msra.mxu0 0.0
    %62 = vmatprep.subr.mxu0 0.0
    %63 = vmatpush1.msra.mxu0 0.0
    %64 = vmatprep.subr.mxu0 0.0
    %65 = vmatpush1.msra.mxu0 0.0
    %66 = vmatprep.subr.mxu0 0.0
    %67 = vmatpush1.msra.mxu0 0.0
    %68 = vmatprep.subr.mxu0 0.0
    %69 = vmatpush1.msra.mxu0 0.0
    %70 = vmatprep.subr.mxu0 0.0
    %71 = vmatpush1.msra.mxu0 0.0
    %72 = vmatprep.subr.mxu0 0.0
    %73 = vmatpush1.msra.mxu0 0.0
    %74 = vmatprep.subr.mxu0 0.0
    %75 = vmatpush1.msra.mxu0 0.0
    %76 = vmatprep.subr.mxu0 0.0
    %77 = vmatpush1.msra.mxu0 0.0
    %78 = vmatprep.subr.mxu0 0.0
    %79 = vmatpush1.msra.mxu0 0.0
    %80 = vmatprep.subr.mxu0 0.0
    %81 = vmatpush1.msra.mxu0 0.0
    %82 = vmatprep.subr.mxu0 0.0
    %83 = vmatpush1.msra.mxu0 0.0
    %84 = vmatprep.subr.mxu0 0.0
    %85 = vmatpush1.msra.mxu0 0.0
    %86 = vmatprep.subr.mxu0 0.0
    %87 = vmatpush1.msra.mxu0 0.0
    %88 = vmatprep.subr.mxu0 0.0
    %89 = vmatpush1.msra.mxu0 0.0
    %90 = vmatprep.subr.mxu0 0.0
    %91 = vmatpush1.msra.mxu0 0.0
    %92 = vmatprep.subr.mxu0 0.0
    %93 = vmatpush1.msra.mxu0 0.0
    %94 = vmatprep.subr.mxu0 0.0
    %95 = vmatpush1.msra.mxu0 0.0
    %96 = vmatprep.subr.mxu0 0.0
    %97 = vmatpush1.msra.mxu0 0.0
    %98 = vmatprep.subr.mxu0 0.0
    %99 = vmatpush1.msra.mxu0 0.0
    %100 = vmatprep.subr.mxu0 0.0
    %101 = vmatpush1.msra.mxu0 0.0
    %102 = vmatprep.subr.mxu0 0.0
    %103 = vmatpush1.msra.mxu0 0.0
    %104 = vmatprep.subr.mxu0 0.0
    %105 = vmatpush1.msra.mxu0 0.0
    %106 = vmatprep.subr.mxu0 0.0
    %107 = vmatpush1.msra.mxu0 0.0
    %108 = vmatprep.subr.mxu0 0.0
    %109 = vmatpush1.msra.mxu0 0.0
    %110 = vmatprep.subr.mxu0 0.0
    %111 = vmatpush1.msra.mxu0 0.0
    %112 = vmatprep.subr.mxu0 0.0
    %113 = vmatpush1.msra.mxu0 0.0
    %114 = vmatprep.subr.mxu0 0.0
    %115 = vmatpush1.msra.mxu0 0.0
    %116 = vmatprep.mubr.f32.mxu0 0.0
    %117 = vmatmul.mubr.f32.gmra.mrb[0].mxu0 %v41
    %v118 = vpop.f32.mrb[0].mxu0
    %v119 = vadd.f32 0.0, %v118
    %v120 = vpop.f32.mrb[0].mxu0
    %121 = vmatprep.mubr.f32.mxu0 0.0
    %122 = vmatmul.mubr.f32.gmra.mrb[0].mxu0 %v44
    %v123 = vpop.f32.mrb[0].mxu0
    %v124 = vadd.f32 0.0, %v123
    %v125 = vpop.f32.mrb[0].mxu0
    %126 = vmatprep.mubr.f32.mxu0 0.0
    %127 = vmatmul.mubr.f32.gmra.mrb[0].mxu0 %v47
    %v128 = vpop.f32.mrb[0].mxu0
    %v129 = vadd.f32 0.0, %v128
    %v130 = vpop.f32.mrb[0].mxu0
    %131 = vmatprep.mubr.f32.mxu0 0.0
    %132 = vmatmul.mubr.f32.gmra.mrb[0].mxu0 %v50
    %v133 = vpop.f32.mrb[0].mxu0
    %v134 = vadd.f32 0.0, %v133
    %v135 = vpop.f32.mrb[0].mxu0
    %136 = vdwg.mxu0
    %137 = vmatprep.subr.mxu0 0.0
    %138 = vmatpush1.msra.mxu0 %v119
    %139 = vmatprep.subr.mxu0 0.0
    %140 = vmatpush1.msra.mxu0 %v124
    %141 = vmatprep.subr.mxu0 0.0
    %142 = vmatpush1.msra.mxu0 %v129
    %143 = vmatprep.subr.mxu0 0.0
    %144 = vmatpush1.msra.mxu0 %v134
    %145 = vmatprep.subr.mxu0 0.0
    %146 = vmatpush1.msra.mxu0 0.0
    %147 = vmatprep.subr.mxu0 0.0
    %148 = vmatpush1.msra.mxu0 0.0
    %149 = vmatprep.subr.mxu0 0.0
    %150 = vmatpush1.msra.mxu0 0.0
    %151 = vmatprep.subr.mxu0 0.0
    %152 = vmatpush1.msra.mxu0 0.0
    %153 = vmatprep.subr.mxu0 0.0
    %154 = vmatpush1.msra.mxu0 0.0
    %155 = vmatprep.subr.mxu0 0.0
    %156 = vmatpush1.msra.mxu0 0.0
    %157 = vmatprep.subr.mxu0 0.0
    %158 = vmatpush1.msra.mxu0 0.0
    %159 = vmatprep.subr.mxu0 0.0
    %160 = vmatpush1.msra.mxu0 0.0
    %161 = vmatprep.subr.mxu0 0.0
    %162 = vmatpush1.msra.mxu0 0.0
    %163 = vmatprep.subr.mxu0 0.0
    %164 = vmatpush1.msra.mxu0 0.0
    %165 = vmatprep.subr.mxu0 0.0
    %166 = vmatpush1.msra.mxu0 0.0
    %167 = vmatprep.subr.mxu0 0.0
    %168 = vmatpush1.msra.mxu0 0.0
    %169 = vmatprep.subr.mxu0 0.0
    %170 = vmatpush1.msra.mxu0 0.0
    %171 = vmatprep.subr.mxu0 0.0
    %172 = vmatpush1.msra.mxu0 0.0
    %173 = vmatprep.subr.mxu0 0.0
    %174 = vmatpush1.msra.mxu0 0.0
    %175 = vmatprep.subr.mxu0 0.0
    %176 = vmatpush1.msra.mxu0 0.0
    %177 = vmatprep.subr.mxu0 0.0
    %178 = vmatpush1.msra.mxu0 0.0
    %179 = vmatprep.subr.mxu0 0.0
    %180 = vmatpush1.msra.mxu0 0.0
    %181 = vmatprep.subr.mxu0 0.0
    %182 = vmatpush1.msra.mxu0 0.0
    %183 = vmatprep.subr.mxu0 0.0
    %184 = vmatpush1.msra.mxu0 0.0
    %185 = vmatprep.subr.mxu0 0.0
    %186 = vmatpush1.msra.mxu0 0.0
    %187 = vmatprep.subr.mxu0 0.0
    %188 = vmatpush1.msra.mxu0 0.0
    %189 = vmatprep.subr.mxu0 0.0
    %190 = vmatpush1.msra.mxu0 0.0
    %191 = vmatprep.subr.mxu0 0.0
    %192 = vmatpush1.msra.mxu0 0.0
    %193 = vmatprep.subr.mxu0 0.0
    %194 = vmatpush1.msra.mxu0 0.0
    %195 = vmatprep.subr.mxu0 0.0
    %196 = vmatpush1.msra.mxu0 0.0
    %197 = vmatprep.subr.mxu0 0.0
    %198 = vmatpush1.msra.mxu0 0.0
    %199 = vmatprep.subr.mxu0 0.0
    %200 = vmatpush1.msra.mxu0 0.0
    %201 = vmatprep.mubr.f32.mxu0 0.0
    %202 = vmatmul.mubr.f32.gmra.mrb[0].mxu0 %v41
    %v203 = vpop.f32.mrb[0].mxu0
    %v204 = vadd.f32 0.0, %v203
    %v205 = vpop.f32.mrb[0].mxu0
    %206 = vmatprep.mubr.f32.mxu0 0.0
    %207 = vmatmul.mubr.f32.gmra.mrb[0].mxu0 %v44
    %v208 = vpop.f32.mrb[0].mxu0
    %v209 = vadd.f32 0.0, %v208
    %v210 = vpop.f32.mrb[0].mxu0
    %211 = vmatprep.mubr.f32.mxu0 0.0
    %212 = vmatmul.mubr.f32.gmra.mrb[0].mxu0 %v47
    %v213 = vpop.f32.mrb[0].mxu0
    %v214 = vadd.f32 0.0, %v213
    %v215 = vpop.f32.mrb[0].mxu0
    %216 = vmatprep.mubr.f32.mxu0 0.0
    %217 = vmatmul.mubr.f32.gmra.mrb[0].mxu0 %v50
    %v218 = vpop.f32.mrb[0].mxu0
    %v219 = vadd.f32 0.0, %v218
    %v220 = vpop.f32.mrb[0].mxu0
    %221 = vdwg.mxu0
    %v222 = vmul.f32 %v204, 2.0
    %v223 = vmul.f32 %v209, 2.0
    %v224 = vmul.f32 %v214, 2.0
    %v225 = vmul.f32 %v219, 2.0
    %v226 = vsub.f32 %v222, %v35
    %v227 = vsub.f32 %v223, %v36
    %v228 = vsub.f32 %v224, %v37
    %v229 = vsub.f32 %v225, %v38
    %v230 = vld [vmem:[#allocation2] sm:$0xff]
    %v231 = vld [vmem:[#allocation2 + $0x8] sm:$0xff]
    %v232 = vld [vmem:[#allocation2 + $0x10] sm:$0xff]
    %v233 = vld [vmem:[#allocation2 + $0x18] sm:$0xff]
    %v234 = vld [vmem:[#allocation2 + $0x20] sm:$0xff]
    %v235 = vld [vmem:[#allocation2 + $0x28] sm:$0xff]
    %v236 = vld [vmem:[#allocation2 + $0x30] sm:$0xff]
    %v237 = vld [vmem:[#allocation2 + $0x38] sm:$0xff]
    %v238 = vld [vmem:[#allocation2 + $0x40] sm:$0xff]
    %v239 = vld [vmem:[#allocation2 + $0x48] sm:$0xff]
    %v240 = vld [vmem:[#allocation2 + $0x50] sm:$0xff]
    %v241 = vld [vmem:[#allocation2 + $0x58] sm:$0xff]
    %v242 = vld [vmem:[#allocation2 + $0x60] sm:$0xff]
    %v243 = vld [vmem:[#allocation2 + $0x68] sm:$0xff]
    %v244 = vld [vmem:[#allocation2 + $0x70] sm:$0xff]
    %v245 = vld [vmem:[#allocation2 + $0x78] sm:$0x1]
    %vm246 = vcmask 326656
    %v248 = vsel %vm246, %v119, 0
    %v251 = vsel %vm246, %v124, 0
    %v254 = vsel %vm246, %v129, 0
    %v257 = vsel %vm246, %v134, 0
    %259 = vmatprep.subr.mxu0 0.0
    %260 = vmatpush1.msra.mxu0 %v235
    %261 = vmatprep.subr.mxu0 0.0
    %262 = vmatpush1.msra.mxu0 %v236
    %263 = vmatprep.subr.mxu0 0.0
    %264 = vmatpush1.msra.mxu0 %v237
    %265 = vmatprep.subr.mxu0 0.0
    %266 = vmatpush1.msra.mxu0 %v238
    %267 = vmatprep.subr.mxu0 0.0
    %268 = vmatpush1.msra.mxu0 %v239
    %269 = vmatprep.subr.mxu0 0.0
    %270 = vmatpush1.msra.mxu0 0.0
    %271 = vmatprep.subr.mxu0 0.0
    %272 = vmatpush1.msra.mxu0 0.0
    %273 = vmatprep.subr.mxu0 0.0
    %274 = vmatpush1.msra.mxu0 0.0
    %275 = vmatprep.subr.mxu0 0.0
    %276 = vmatpush1.msra.mxu0 0.0
    %277 = vmatprep.subr.mxu0 0.0
    %278 = vmatpush1.msra.mxu0 0.0
    %279 = vmatprep.subr.mxu0 0.0
    %280 = vmatpush1.msra.mxu0 0.0
    %281 = vmatprep.subr.mxu0 0.0
    %282 = vmatpush1.msra.mxu0 0.0
    %283 = vmatprep.subr.mxu0 0.0
    %284 = vmatpush1.msra.mxu0 0.0
    %285 = vmatprep.subr.mxu0 0.0
    %286 = vmatpush1.msra.mxu0 0.0
    %287 = vmatprep.subr.mxu0 0.0
    %288 = vmatpush1.msra.mxu0 0.0
    %289 = vmatprep.subr.mxu0 0.0
    %290 = vmatpush1.msra.mxu0 0.0
    %291 = vmatprep.subr.mxu0 0.0
    %292 = vmatpush1.msra.mxu0 0.0
    %293 = vmatprep.subr.mxu0 0.0
    %294 = vmatpush1.msra.mxu0 0.0
    %295 = vmatprep.subr.mxu0 0.0
    %296 = vmatpush1.msra.mxu0 0.0
    %297 = vmatprep.subr.mxu0 0.0
    %298 = vmatpush1.msra.mxu0 0.0
    %299 = vmatprep.subr.mxu0 0.0
    %300 = vmatpush1.msra.mxu0 0.0
    %301 = vmatprep.subr.mxu0 0.0
    %302 = vmatpush1.msra.mxu0 0.0
    %303 = vmatprep.subr.mxu0 0.0
    %304 = vmatpush1.msra.mxu0 0.0
    %305 = vmatprep.subr.mxu0 0.0
    %306 = vmatpush1.msra.mxu0 0.0
    %307 = vmatprep.subr.mxu0 0.0
    %308 = vmatpush1.msra.mxu0 0.0
    %309 = vmatprep.subr.mxu0 0.0
    %310 = vmatpush1.msra.mxu0 0.0
    %311 = vmatprep.subr.mxu0 0.0
    %312 = vmatpush1.msra.mxu0 0.0
    %313 = vmatprep.subr.mxu0 0.0
    %314 = vmatpush1.msra.mxu0 0.0
    %315 = vmatprep.subr.mxu0 0.0
    %316 = vmatpush1.msra.mxu0 0.0
    %317 = vmatprep.subr.mxu0 0.0
    %318 = vmatpush1.msra.mxu0 0.0
    %319 = vmatprep.subr.mxu0 0.0
    %320 = vmatpush1.msra.mxu0 0.0
    %321 = vmatprep.subr.mxu0 0.0
    %322 = vmatpush1.msra.mxu0 0.0
    %323 = vmatprep.mubr.f32.mxu0 0.0
    %324 = vmatmul.mubr.f32.gmra.mrb[0].mxu0 %v248
    %v325 = vpop.f32.mrb[0].mxu0
    %v326 = vadd.f32 0.0, %v325
    %v327 = vpop.f32.mrb[0].mxu0
    %328 = vmatprep.mubr.f32.mxu0 0.0
    %329 = vmatmul.mubr.f32.gmra.mrb[0].mxu0 %v251
    %v330 = vpop.f32.mrb[0].mxu0
    %v331 = vadd.f32 0.0, %v330
    %v332 = vpop.f32.mrb[0].mxu0
    %333 = vmatprep.mubr.f32.mxu0 0.0
    %334 = vmatmul.mubr.f32.gmra.mrb[0].mxu0 %v254
    %v335 = vpop.f32.mrb[0].mxu0
    %v336 = vadd.f32 0.0, %v335
    %v337 = vpop.f32.mrb[0].mxu0
    %338 = vmatprep.mubr.f32.mxu0 0.0
    %339 = vmatmul.mubr.f32.gmra.mrb[0].mxu0 %v257
    %v340 = vpop.f32.mrb[0].mxu0
    %v341 = vadd.f32 0.0, %v340
    %v342 = vpop.f32.mrb[0].mxu0
    %343 = vdwg.mxu0
    %v345 = vsel %vm246, %v35, 0
    %v348 = vsel %vm246, %v36, 0
    %v351 = vsel %vm246, %v37, 0
    %v354 = vsel %vm246, %v38, 0
    %356 = vmatprep.subr.mxu0 0.0
    %357 = vmatpush1.msra.mxu0 %v230
    %358 = vmatprep.subr.mxu0 0.0
    %359 = vmatpush1.msra.mxu0 %v231
    %360 = vmatprep.subr.mxu0 0.0
    %361 = vmatpush1.msra.mxu0 %v232
    %362 = vmatprep.subr.mxu0 0.0
    %363 = vmatpush1.msra.mxu0 %v233
    %364 = vmatprep.subr.mxu0 0.0
    %365 = vmatpush1.msra.mxu0 %v234
    %366 = vmatprep.subr.mxu0 0.0
    %367 = vmatpush1.msra.mxu0 0.0
    %368 = vmatprep.subr.mxu0 0.0
    %369 = vmatpush1.msra.mxu0 0.0
    %370 = vmatprep.subr.mxu0 0.0
    %371 = vmatpush1.msra.mxu0 0.0
    %372 = vmatprep.subr.mxu0 0.0
    %373 = vmatpush1.msra.mxu0 0.0
    %374 = vmatprep.subr.mxu0 0.0
    %375 = vmatpush1.msra.mxu0 0.0
    %376 = vmatprep.subr.mxu0 0.0
    %377 = vmatpush1.msra.mxu0 0.0
    %378 = vmatprep.subr.mxu0 0.0
    %379 = vmatpush1.msra.mxu0 0.0
    %380 = vmatprep.subr.mxu0 0.0
    %381 = vmatpush1.msra.mxu0 0.0
    %382 = vmatprep.subr.mxu0 0.0
    %383 = vmatpush1.msra.mxu0 0.0
    %384 = vmatprep.subr.mxu0 0.0
    %385 = vmatpush1.msra.mxu0 0.0
    %386 = vmatprep.subr.mxu0 0.0
    %387 = vmatpush1.msra.mxu0 0.0
    %388 = vmatprep.subr.mxu0 0.0
    %389 = vmatpush1.msra.mxu0 0.0
    %390 = vmatprep.subr.mxu0 0.0
    %391 = vmatpush1.msra.mxu0 0.0
    %392 = vmatprep.subr.mxu0 0.0
    %393 = vmatpush1.msra.mxu0 0.0
    %394 = vmatprep.subr.mxu0 0.0
    %395 = vmatpush1.msra.mxu0 0.0
    %396 = vmatprep.subr.mxu0 0.0
    %397 = vmatpush1.msra.mxu0 0.0
    %398 = vmatprep.subr.mxu0 0.0
    %399 = vmatpush1.msra.mxu0 0.0
    %400 = vmatprep.subr.mxu0 0.0
    %401 = vmatpush1.msra.mxu0 0.0
    %402 = vmatprep.subr.mxu0 0.0
    %403 = vmatpush1.msra.mxu0 0.0
    %404 = vmatprep.subr.mxu0 0.0
    %405 = vmatpush1.msra.mxu0 0.0
    %406 = vmatprep.subr.mxu0 0.0
    %407 = vmatpush1.msra.mxu0 0.0
    %408 = vmatprep.subr.mxu0 0.0
    %409 = vmatpush1.msra.mxu0 0.0
    %410 = vmatprep.subr.mxu0 0.0
    %411 = vmatpush1.msra.mxu0 0.0
    %412 = vmatprep.subr.mxu0 0.0
    %413 = vmatpush1.msra.mxu0 0.0
    %414 = vmatprep.subr.mxu0 0.0
    %415 = vmatpush1.msra.mxu0 0.0
    %416 = vmatprep.subr.mxu0 0.0
    %417 = vmatpush1.msra.mxu0 0.0
    %418 = vmatprep.subr.mxu0 0.0
    %419 = vmatpush1.msra.mxu0 0.0
    %420 = vmatprep.mubr.f32.mxu0 0.0
    %421 = vmatmul.mubr.f32.gmra.mrb[0].mxu0 %v345
    %v422 = vpop.f32.mrb[0].mxu0
    %v423 = vadd.f32 %v326, %v422
    %v424 = vpop.f32.mrb[0].mxu0
    %425 = vmatprep.mubr.f32.mxu0 0.0
    %426 = vmatmul.mubr.f32.gmra.mrb[0].mxu0 %v348
    %v427 = vpop.f32.mrb[0].mxu0
    %v428 = vadd.f32 %v331, %v427
    %v429 = vpop.f32.mrb[0].mxu0
    %430 = vmatprep.mubr.f32.mxu0 0.0
    %431 = vmatmul.mubr.f32.gmra.mrb[0].mxu0 %v351
    %v432 = vpop.f32.mrb[0].mxu0
    %v433 = vadd.f32 %v336, %v432
    %v434 = vpop.f32.mrb[0].mxu0
    %435 = vmatprep.mubr.f32.mxu0 0.0
    %436 = vmatmul.mubr.f32.gmra.mrb[0].mxu0 %v354
    %v437 = vpop.f32.mrb[0].mxu0
    %v438 = vadd.f32 %v341, %v437
    %v439 = vpop.f32.mrb[0].mxu0
    %440 = vdwg.mxu0
    %v442 = vsel %vm246, %v226, 0
    %v445 = vsel %vm246, %v227, 0
    %v448 = vsel %vm246, %v228, 0
    %v451 = vsel %vm246, %v229, 0
    %453 = vmatprep.subr.mxu0 0.0
    %454 = vmatpush1.msra.mxu0 %v240
    %455 = vmatprep.subr.mxu0 0.0
    %456 = vmatpush1.msra.mxu0 %v241
    %457 = vmatprep.subr.mxu0 0.0
    %458 = vmatpush1.msra.mxu0 %v242
    %459 = vmatprep.subr.mxu0 0.0
    %460 = vmatpush1.msra.mxu0 %v243
    %461 = vmatprep.subr.mxu0 0.0
    %462 = vmatpush1.msra.mxu0 %v244
    %463 = vmatprep.subr.mxu0 0.0
    %464 = vmatpush1.msra.mxu0 0.0
    %465 = vmatprep.subr.mxu0 0.0
    %466 = vmatpush1.msra.mxu0 0.0
    %467 = vmatprep.subr.mxu0 0.0
    %468 = vmatpush1.msra.mxu0 0.0
    %469 = vmatprep.subr.mxu0 0.0
    %470 = vmatpush1.msra.mxu0 0.0
    %471 = vmatprep.subr.mxu0 0.0
    %472 = vmatpush1.msra.mxu0 0.0
    %473 = vmatprep.subr.mxu0 0.0
    %474 = vmatpush1.msra.mxu0 0.0
    %475 = vmatprep.subr.mxu0 0.0
    %476 = vmatpush1.msra.mxu0 0.0
    %477 = vmatprep.subr.mxu0 0.0
    %478 = vmatpush1.msra.mxu0 0.0
    %479 = vmatprep.subr.mxu0 0.0
    %480 = vmatpush1.msra.mxu0 0.0
    %481 = vmatprep.subr.mxu0 0.0
    %482 = vmatpush1.msra.mxu0 0.0
    %483 = vmatprep.subr.mxu0 0.0
    %484 = vmatpush1.msra.mxu0 0.0
    %485 = vmatprep.subr.mxu0 0.0
    %486 = vmatpush1.msra.mxu0 0.0
    %487 = vmatprep.subr.mxu0 0.0
    %488 = vmatpush1.msra.mxu0 0.0
    %489 = vmatprep.subr.mxu0 0.0
    %490 = vmatpush1.msra.mxu0 0.0
    %491 = vmatprep.subr.mxu0 0.0
    %492 = vmatpush1.msra.mxu0 0.0
    %493 = vmatprep.subr.mxu0 0.0
    %494 = vmatpush1.msra.mxu0 0.0
    %495 = vmatprep.subr.mxu0 0.0
    %496 = vmatpush1.msra.mxu0 0.0
    %497 = vmatprep.subr.mxu0 0.0
    %498 = vmatpush1.msra.mxu0 0.0
    %499 = vmatprep.subr.mxu0 0.0
    %500 = vmatpush1.msra.mxu0 0.0
    %501 = vmatprep.subr.mxu0 0.0
    %502 = vmatpush1.msra.mxu0 0.0
    %503 = vmatprep.subr.mxu0 0.0
    %504 = vmatpush1.msra.mxu0 0.0
    %505 = vmatprep.subr.mxu0 0.0
    %506 = vmatpush1.msra.mxu0 0.0
    %507 = vmatprep.subr.mxu0 0.0
    %508 = vmatpush1.msra.mxu0 0.0
    %509 = vmatprep.subr.mxu0 0.0
    %510 = vmatpush1.msra.mxu0 0.0
    %511 = vmatprep.subr.mxu0 0.0
    %512 = vmatpush1.msra.mxu0 0.0
    %513 = vmatprep.subr.mxu0 0.0
    %514 = vmatpush1.msra.mxu0 0.0
    %515 = vmatprep.subr.mxu0 0.0
    %516 = vmatpush1.msra.mxu0 0.0
    %517 = vmatprep.mubr.f32.mxu0 0.0
    %518 = vmatmul.mubr.f32.gmra.mrb[0].mxu0 %v442
    %v519 = vpop.f32.mrb[0].mxu0
    %v520 = vadd.f32 0.0, %v519
    %v521 = vpop.f32.mrb[0].mxu0
    %522 = vmatprep.mubr.f32.mxu0 0.0
    %523 = vmatmul.mubr.f32.gmra.mrb[0].mxu0 %v445
    %v524 = vpop.f32.mrb[0].mxu0
    %v525 = vadd.f32 0.0, %v524
    %v526 = vpop.f32.mrb[0].mxu0
    %527 = vmatprep.mubr.f32.mxu0 0.0
    %528 = vmatmul.mubr.f32.gmra.mrb[0].mxu0 %v448
    %v529 = vpop.f32.mrb[0].mxu0
    %v530 = vadd.f32 0.0, %v529
    %v531 = vpop.f32.mrb[0].mxu0
    %532 = vmatprep.mubr.f32.mxu0 0.0
    %533 = vmatmul.mubr.f32.gmra.mrb[0].mxu0 %v451
    %v534 = vpop.f32.mrb[0].mxu0
    %v535 = vadd.f32 0.0, %v534
    %v536 = vpop.f32.mrb[0].mxu0
    %537 = vdwg.mxu0
    %v538 = vadd.f32 %v423, %v520
    %v539 = vadd.f32 %v428, %v525
    %v540 = vadd.f32 %v433, %v530
    %v541 = vadd.f32 %v438, %v535
    %v542 = vlaneseq
    %v543 = vshrl.u32 %v542, 7
    %v544 = vsub.s32 0, %v543
    %v545 = vrot.slane %v245, %v544
    %v546 = vadd.f32 %v538, %v545
    %v547 = vadd.f32 %v539, %v545
    %v548 = vadd.f32 %v540, %v545
    %v549 = vadd.f32 %v541, %v545
    %v550 = vld [vmem:[%s3 + $0x68] sm:$0xff]
    %v551 = vld [vmem:[%s3 + $0x70] sm:$0xff]
    %v552 = vld [vmem:[%s3 + $0x78] sm:$0xff]
    %v553 = vld [vmem:[%s3 + $0x80] sm:$0xff]
    %v554 = vld [vmem:[%s3 + $0x88] sm:$0xff]
    %v555 = vld [vmem:[%s3 + $0x90] sm:$0xff]
    %v556 = vld [vmem:[%s3 + $0x98] sm:$0xff]
    %v557 = vld [vmem:[%s3 + $0xa0] sm:$0xff]
    %v558 = vld [vmem:[%s3 + $0xa8] sm:$0xff]
    %v559 = vld [vmem:[%s3 + $0xb0] sm:$0xff]
    %v560 = vld [vmem:[%s3 + $0xb8] sm:$0xff]
    %v561 = vld [vmem:[%s3 + $0xc0] sm:$0xff]
    %v562 = vld [vmem:[%s3 + $0x60] sm:$0x1]
    %563 = vrot.lane.b32.xlu0 %v119, 95
    %v564 = vpop.permute.xlu0 %563
    %565 = vrot.lane.b32.xlu0 %v124, 95
    %v566 = vpop.permute.xlu0 %565
    %567 = vrot.lane.b32.xlu0 %v129, 95
    %v568 = vpop.permute.xlu0 %567
    %569 = vrot.lane.b32.xlu0 %v134, 95
    %v570 = vpop.permute.xlu0 %569
    %v571 = vsel %vm39, %v564, 0
    %v573 = vsel %vm39, %v566, 0
    %v575 = vsel %vm39, %v568, 0
    %v577 = vsel %vm39, %v570, 0
    %579 = vmatprep.subr.mxu0 0.0
    %580 = vmatpush1.msra.mxu0 %v554
    %581 = vmatprep.subr.mxu0 0.0
    %582 = vmatpush1.msra.mxu0 %v555
    %583 = vmatprep.subr.mxu0 0.0
    %584 = vmatpush1.msra.mxu0 %v556
    %585 = vmatprep.subr.mxu0 0.0
    %586 = vmatpush1.msra.mxu0 %v557
    %587 = vmatprep.subr.mxu0 0.0
    %588 = vmatpush1.msra.mxu0 0.0
    %589 = vmatprep.subr.mxu0 0.0
    %590 = vmatpush1.msra.mxu0 0.0
    %591 = vmatprep.subr.mxu0 0.0
    %592 = vmatpush1.msra.mxu0 0.0
    %593 = vmatprep.subr.mxu0 0.0
    %594 = vmatpush1.msra.mxu0 0.0
    %595 = vmatprep.subr.mxu0 0.0
    %596 = vmatpush1.msra.mxu0 0.0
    %597 = vmatprep.subr.mxu0 0.0
    %598 = vmatpush1.msra.mxu0 0.0
    %599 = vmatprep.subr.mxu0 0.0
    %600 = vmatpush1.msra.mxu0 0.0
    %601 = vmatprep.subr.mxu0 0.0
    %602 = vmatpush1.msra.mxu0 0.0
    %603 = vmatprep.subr.mxu0 0.0
    %604 = vmatpush1.msra.mxu0 0.0
    %605 = vmatprep.subr.mxu0 0.0
    %606 = vmatpush1.msra.mxu0 0.0
    %607 = vmatprep.subr.mxu0 0.0
    %608 = vmatpush1.msra.mxu0 0.0
    %609 = vmatprep.subr.mxu0 0.0
    %610 = vmatpush1.msra.mxu0 0.0
    %611 = vmatprep.subr.mxu0 0.0
    %612 = vmatpush1.msra.mxu0 0.0
    %613 = vmatprep.subr.mxu0 0.0
    %614 = vmatpush1.msra.mxu0 0.0
    %615 = vmatprep.subr.mxu0 0.0
    %616 = vmatpush1.msra.mxu0 0.0
    %617 = vmatprep.subr.mxu0 0.0
    %618 = vmatpush1.msra.mxu0 0.0
    %619 = vmatprep.subr.mxu0 0.0
    %620 = vmatpush1.msra.mxu0 0.0
    %621 = vmatprep.subr.mxu0 0.0
    %622 = vmatpush1.msra.mxu0 0.0
    %623 = vmatprep.subr.mxu0 0.0
    %624 = vmatpush1.msra.mxu0 0.0
    %625 = vmatprep.subr.mxu0 0.0
    %626 = vmatpush1.msra.mxu0 0.0
    %627 = vmatprep.subr.mxu0 0.0
    %628 = vmatpush1.msra.mxu0 0.0
    %629 = vmatprep.subr.mxu0 0.0
    %630 = vmatpush1.msra.mxu0 0.0
    %631 = vmatprep.subr.mxu0 0.0
    %632 = vmatpush1.msra.mxu0 0.0
    %633 = vmatprep.subr.mxu0 0.0
    %634 = vmatpush1.msra.mxu0 0.0
    %635 = vmatprep.subr.mxu0 0.0
    %636 = vmatpush1.msra.mxu0 0.0
    %637 = vmatprep.subr.mxu0 0.0
    %638 = vmatpush1.msra.mxu0 0.0
    %639 = vmatprep.subr.mxu0 0.0
    %640 = vmatpush1.msra.mxu0 0.0
    %641 = vmatprep.subr.mxu0 0.0
    %642 = vmatpush1.msra.mxu0 0.0
    %643 = vmatprep.mubr.f32.mxu0 0.0
    %644 = vmatmul.mubr.f32.gmra.mrb[0].mxu0 %v571
    %v645 = vpop.f32.mrb[0].mxu0
    %v646 = vadd.f32 0.0, %v645
    %v647 = vpop.f32.mrb[0].mxu0
    %648 = vmatprep.mubr.f32.mxu0 0.0
    %649 = vmatmul.mubr.f32.gmra.mrb[0].mxu0 %v573
    %v650 = vpop.f32.mrb[0].mxu0
    %v651 = vadd.f32 0.0, %v650
    %v652 = vpop.f32.mrb[0].mxu0
    %653 = vmatprep.mubr.f32.mxu0 0.0
    %654 = vmatmul.mubr.f32.gmra.mrb[0].mxu0 %v575
    %v655 = vpop.f32.mrb[0].mxu0
    %v656 = vadd.f32 0.0, %v655
    %v657 = vpop.f32.mrb[0].mxu0
    %658 = vmatprep.mubr.f32.mxu0 0.0
    %659 = vmatmul.mubr.f32.gmra.mrb[0].mxu0 %v577
    %v660 = vpop.f32.mrb[0].mxu0
    %v661 = vadd.f32 0.0, %v660
    %v662 = vpop.f32.mrb[0].mxu0
    %663 = vdwg.mxu0
    %664 = vrot.lane.b32.xlu0 %v35, 95
    %v665 = vpop.permute.xlu0 %664
    %666 = vrot.lane.b32.xlu0 %v36, 95
    %v667 = vpop.permute.xlu0 %666
    %668 = vrot.lane.b32.xlu0 %v37, 95
    %v669 = vpop.permute.xlu0 %668
    %670 = vrot.lane.b32.xlu0 %v38, 95
    %v671 = vpop.permute.xlu0 %670
    %v672 = vsel %vm39, %v665, 0
    %v674 = vsel %vm39, %v667, 0
    %v676 = vsel %vm39, %v669, 0
    %v678 = vsel %vm39, %v671, 0
    %680 = vmatprep.subr.mxu0 0.0
    %681 = vmatpush1.msra.mxu0 %v550
    %682 = vmatprep.subr.mxu0 0.0
    %683 = vmatpush1.msra.mxu0 %v551
    %684 = vmatprep.subr.mxu0 0.0
    %685 = vmatpush1.msra.mxu0 %v552
    %686 = vmatprep.subr.mxu0 0.0
    %687 = vmatpush1.msra.mxu0 %v553
    %688 = vmatprep.subr.mxu0 0.0
    %689 = vmatpush1.msra.mxu0 0.0
    %690 = vmatprep.subr.mxu0 0.0
    %691 = vmatpush1.msra.mxu0 0.0
    %692 = vmatprep.subr.mxu0 0.0
    %693 = vmatpush1.msra.mxu0 0.0
    %694 = vmatprep.subr.mxu0 0.0
    %695 = vmatpush1.msra.mxu0 0.0
    %696 = vmatprep.subr.mxu0 0.0
    %697 = vmatpush1.msra.mxu0 0.0
    %698 = vmatprep.subr.mxu0 0.0
    %699 = vmatpush1.msra.mxu0 0.0
    %700 = vmatprep.subr.mxu0 0.0
    %701 = vmatpush1.msra.mxu0 0.0
    %702 = vmatprep.subr.mxu0 0.0
    %703 = vmatpush1.msra.mxu0 0.0
    %704 = vmatprep.subr.mxu0 0.0
    %705 = vmatpush1.msra.mxu0 0.0
    %706 = vmatprep.subr.mxu0 0.0
    %707 = vmatpush1.msra.mxu0 0.0
    %708 = vmatprep.subr.mxu0 0.0
    %709 = vmatpush1.msra.mxu0 0.0
    %710 = vmatprep.subr.mxu0 0.0
    %711 = vmatpush1.msra.mxu0 0.0
    %712 = vmatprep.subr.mxu0 0.0
    %713 = vmatpush1.msra.mxu0 0.0
    %714 = vmatprep.subr.mxu0 0.0
    %715 = vmatpush1.msra.mxu0 0.0
    %716 = vmatprep.subr.mxu0 0.0
    %717 = vmatpush1.msra.mxu0 0.0
    %718 = vmatprep.subr.mxu0 0.0
    %719 = vmatpush1.msra.mxu0 0.0
    %720 = vmatprep.subr.mxu0 0.0
    %721 = vmatpush1.msra.mxu0 0.0
    %722 = vmatprep.subr.mxu0 0.0
    %723 = vmatpush1.msra.mxu0 0.0
    %724 = vmatprep.subr.mxu0 0.0
    %725 = vmatpush1.msra.mxu0 0.0
    %726 = vmatprep.subr.mxu0 0.0
    %727 = vmatpush1.msra.mxu0 0.0
    %728 = vmatprep.subr.mxu0 0.0
    %729 = vmatpush1.msra.mxu0 0.0
    %730 = vmatprep.subr.mxu0 0.0
    %731 = vmatpush1.msra.mxu0 0.0
    %732 = vmatprep.subr.mxu0 0.0
    %733 = vmatpush1.msra.mxu0 0.0
    %734 = vmatprep.subr.mxu0 0.0
    %735 = vmatpush1.msra.mxu0 0.0
    %736 = vmatprep.subr.mxu0 0.0
    %737 = vmatpush1.msra.mxu0 0.0
    %738 = vmatprep.subr.mxu0 0.0
    %739 = vmatpush1.msra.mxu0 0.0
    %740 = vmatprep.subr.mxu0 0.0
    %741 = vmatpush1.msra.mxu0 0.0
    %742 = vmatprep.subr.mxu0 0.0
    %743 = vmatpush1.msra.mxu0 0.0
    %744 = vmatprep.mubr.f32.mxu0 0.0
    %745 = vmatmul.mubr.f32.gmra.mrb[0].mxu0 %v672
    %v746 = vpop.f32.mrb[0].mxu0
    %v747 = vadd.f32 %v646, %v746
    %v748 = vpop.f32.mrb[0].mxu0
    %749 = vmatprep.mubr.f32.mxu0 0.0
    %750 = vmatmul.mubr.f32.gmra.mrb[0].mxu0 %v674
    %v751 = vpop.f32.mrb[0].mxu0
    %v752 = vadd.f32 %v651, %v751
    %v753 = vpop.f32.mrb[0].mxu0
    %754 = vmatprep.mubr.f32.mxu0 0.0
    %755 = vmatmul.mubr.f32.gmra.mrb[0].mxu0 %v676
    %v756 = vpop.f32.mrb[0].mxu0
    %v757 = vadd.f32 %v656, %v756
    %v758 = vpop.f32.mrb[0].mxu0
    %759 = vmatprep.mubr.f32.mxu0 0.0
    %760 = vmatmul.mubr.f32.gmra.mrb[0].mxu0 %v678
    %v761 = vpop.f32.mrb[0].mxu0
    %v762 = vadd.f32 %v661, %v761
    %v763 = vpop.f32.mrb[0].mxu0
    %764 = vdwg.mxu0
    %765 = vrot.lane.b32.xlu0 %v226, 95
    %v766 = vpop.permute.xlu0 %765
    %767 = vrot.lane.b32.xlu0 %v227, 95
    %v768 = vpop.permute.xlu0 %767
    %769 = vrot.lane.b32.xlu0 %v228, 95
    %v770 = vpop.permute.xlu0 %769
    %771 = vrot.lane.b32.xlu0 %v229, 95
    %v772 = vpop.permute.xlu0 %771
    %v773 = vsel %vm39, %v766, 0
    %v775 = vsel %vm39, %v768, 0
    %v777 = vsel %vm39, %v770, 0
    %v779 = vsel %vm39, %v772, 0
    %781 = vmatprep.subr.mxu0 0.0
    %782 = vmatpush1.msra.mxu0 %v558
    %783 = vmatprep.subr.mxu0 0.0
    %784 = vmatpush1.msra.mxu0 %v559
    %785 = vmatprep.subr.mxu0 0.0
    %786 = vmatpush1.msra.mxu0 %v560
    %787 = vmatprep.subr.mxu0 0.0
    %788 = vmatpush1.msra.mxu0 %v561
    %789 = vmatprep.subr.mxu0 0.0
    %790 = vmatpush1.msra.mxu0 0.0
    %791 = vmatprep.subr.mxu0 0.0
    %792 = vmatpush1.msra.mxu0 0.0
    %793 = vmatprep.subr.mxu0 0.0
    %794 = vmatpush1.msra.mxu0 0.0
    %795 = vmatprep.subr.mxu0 0.0
    %796 = vmatpush1.msra.mxu0 0.0
    %797 = vmatprep.subr.mxu0 0.0
    %798 = vmatpush1.msra.mxu0 0.0
    %799 = vmatprep.subr.mxu0 0.0
    %800 = vmatpush1.msra.mxu0 0.0
    %801 = vmatprep.subr.mxu0 0.0
    %802 = vmatpush1.msra.mxu0 0.0
    %803 = vmatprep.subr.mxu0 0.0
    %804 = vmatpush1.msra.mxu0 0.0
    %805 = vmatprep.subr.mxu0 0.0
    %806 = vmatpush1.msra.mxu0 0.0
    %807 = vmatprep.subr.mxu0 0.0
    %808 = vmatpush1.msra.mxu0 0.0
    %809 = vmatprep.subr.mxu0 0.0
    %810 = vmatpush1.msra.mxu0 0.0
    %811 = vmatprep.subr.mxu0 0.0
    %812 = vmatpush1.msra.mxu0 0.0
    %813 = vmatprep.subr.mxu0 0.0
    %814 = vmatpush1.msra.mxu0 0.0
    %815 = vmatprep.subr.mxu0 0.0
    %816 = vmatpush1.msra.mxu0 0.0
    %817 = vmatprep.subr.mxu0 0.0
    %818 = vmatpush1.msra.mxu0 0.0
    %819 = vmatprep.subr.mxu0 0.0
    %820 = vmatpush1.msra.mxu0 0.0
    %821 = vmatprep.subr.mxu0 0.0
    %822 = vmatpush1.msra.mxu0 0.0
    %823 = vmatprep.subr.mxu0 0.0
    %824 = vmatpush1.msra.mxu0 0.0
    %825 = vmatprep.subr.mxu0 0.0
    %826 = vmatpush1.msra.mxu0 0.0
    %827 = vmatprep.subr.mxu0 0.0
    %828 = vmatpush1.msra.mxu0 0.0
    %829 = vmatprep.subr.mxu0 0.0
    %830 = vmatpush1.msra.mxu0 0.0
    %831 = vmatprep.subr.mxu0 0.0
    %832 = vmatpush1.msra.mxu0 0.0
    %833 = vmatprep.subr.mxu0 0.0
    %834 = vmatpush1.msra.mxu0 0.0
    %835 = vmatprep.subr.mxu0 0.0
    %836 = vmatpush1.msra.mxu0 0.0
    %837 = vmatprep.subr.mxu0 0.0
    %838 = vmatpush1.msra.mxu0 0.0
    %839 = vmatprep.subr.mxu0 0.0
    %840 = vmatpush1.msra.mxu0 0.0
    %841 = vmatprep.subr.mxu0 0.0
    %842 = vmatpush1.msra.mxu0 0.0
    %843 = vmatprep.subr.mxu0 0.0
    %844 = vmatpush1.msra.mxu0 0.0
    %845 = vmatprep.mubr.f32.mxu0 0.0
    %846 = vmatmul.mubr.f32.gmra.mrb[0].mxu0 %v773
    %v847 = vpop.f32.mrb[0].mxu0
    %v848 = vadd.f32 0.0, %v847
    %v849 = vpop.f32.mrb[0].mxu0
    %850 = vmatprep.mubr.f32.mxu0 0.0
    %851 = vmatmul.mubr.f32.gmra.mrb[0].mxu0 %v775
    %v852 = vpop.f32.mrb[0].mxu0
    %v853 = vadd.f32 0.0, %v852
    %v854 = vpop.f32.mrb[0].mxu0
    %855 = vmatprep.mubr.f32.mxu0 0.0
    %856 = vmatmul.mubr.f32.gmra.mrb[0].mxu0 %v777
    %v857 = vpop.f32.mrb[0].mxu0
    %v858 = vadd.f32 0.0, %v857
    %v859 = vpop.f32.mrb[0].mxu0
    %860 = vmatprep.mubr.f32.mxu0 0.0
    %861 = vmatmul.mubr.f32.gmra.mrb[0].mxu0 %v779
    %v862 = vpop.f32.mrb[0].mxu0
    %v863 = vadd.f32 0.0, %v862
    %v864 = vpop.f32.mrb[0].mxu0
    %865 = vdwg.mxu0
    %v866 = vadd.f32 %v747, %v848
    %v867 = vadd.f32 %v752, %v853
    %v868 = vadd.f32 %v757, %v858
    %v869 = vadd.f32 %v762, %v863
    %v870 = vlaneseq
    %v871 = vshrl.u32 %v870, 7
    %v872 = vsub.s32 0, %v871
    %v873 = vrot.slane %v562, %v872
    %v874 = vadd.f32 %v866, %v873
    %v875 = vadd.f32 %v867, %v873
    %v876 = vadd.f32 %v868, %v873
    %v877 = vadd.f32 %v869, %v873
    %v878 = vld [vmem:[#allocation2] sm:$0xff]
    %v879 = vld [vmem:[#allocation2 + $0x8] sm:$0xff]
    %v880 = vld [vmem:[#allocation2 + $0x10] sm:$0xff]
    %v881 = vld [vmem:[#allocation2 + $0x18] sm:$0xff]
    %v882 = vld [vmem:[#allocation2 + $0x20] sm:$0xff]
    %v883 = vld [vmem:[#allocation2 + $0x28] sm:$0xff]
    %v884 = vld [vmem:[#allocation2 + $0x30] sm:$0xff]
    %v885 = vld [vmem:[#allocation2 + $0x38] sm:$0xff]
    %v886 = vld [vmem:[#allocation2 + $0x40] sm:$0xff]
    %v887 = vld [vmem:[#allocation2 + $0x48] sm:$0xff]
    %v888 = vld [vmem:[#allocation2 + $0x50] sm:$0xff]
    %v889 = vld [vmem:[#allocation2 + $0x58] sm:$0xff]
    %v890 = vxor.u32 %v546, 2147483648
    %v891 = vxor.u32 %v547, 2147483648
    %v892 = vxor.u32 %v548, 2147483648
    %v893 = vxor.u32 %v549, 2147483648
    %v894 = vmul.f32 %v890, 1.442695
    %v895 = vpow.pop %v894
    %v896 = vmul.f32 %v891, 1.442695
    %v897 = vpow.pop %v896
    %v898 = vmul.f32 %v892, 1.442695
    %v899 = vpow.pop %v898
    %v900 = vmul.f32 %v893, 1.442695
    %v901 = vpow.pop %v900
    %v902 = vadd.f32 %v895, 1.0
    %v903 = vadd.f32 %v897, 1.0
    %v904 = vadd.f32 %v899, 1.0
    %v905 = vadd.f32 %v901, 1.0
    %v906 = vrcp.pop %v902
    %v907 = vmul.f32 1.0, %v906
    %v908 = vrcp.pop %v903
    %v909 = vmul.f32 1.0, %v908
    %v910 = vrcp.pop %v904
    %v911 = vmul.f32 1.0, %v910
    %v912 = vrcp.pop %v905
    %v913 = vmul.f32 1.0, %v912
    %914 = vrot.lane.b32.xlu0 %v35, 127
    %v915 = vpop.permute.xlu0 %914
    %916 = vrot.lane.b32.xlu0 %v36, 127
    %v917 = vpop.permute.xlu0 %916
    %918 = vrot.lane.b32.xlu0 %v37, 127
    %v919 = vpop.permute.xlu0 %918
    %920 = vrot.lane.b32.xlu0 %v38, 127
    %v921 = vpop.permute.xlu0 %920
    %v926 = vmul.f32 %v907, %v915
    %v927 = vmul.f32 %v909, %v917
    %v928 = vmul.f32 %v911, %v919
    %v929 = vmul.f32 %v913, %v921
    %930 = vmatprep.subr.mxu0 0.0
    %931 = vmatpush1.msra.mxu0 %v926
    %932 = vmatprep.subr.mxu0 0.0
    %933 = vmatpush1.msra.mxu0 %v927
    %934 = vmatprep.subr.mxu0 0.0
    %935 = vmatpush1.msra.mxu0 %v928
    %936 = vmatprep.subr.mxu0 0.0
    %937 = vmatpush1.msra.mxu0 %v929
    %938 = vmatprep.subr.mxu0 0.0
    %939 = vmatpush1.msra.mxu0 0.0
    %940 = vmatprep.subr.mxu0 0.0
    %941 = vmatpush1.msra.mxu0 0.0
    %942 = vmatprep.subr.mxu0 0.0
    %943 = vmatpush1.msra.mxu0 0.0
    %944 = vmatprep.subr.mxu0 0.0
    %945 = vmatpush1.msra.mxu0 0.0
    %946 = vmatprep.subr.mxu0 0.0
    %947 = vmatpush1.msra.mxu0 0.0
    %948 = vmatprep.subr.mxu0 0.0
    %949 = vmatpush1.msra.mxu0 0.0
    %950 = vmatprep.subr.mxu0 0.0
    %951 = vmatpush1.msra.mxu0 0.0
    %952 = vmatprep.subr.mxu0 0.0
    %953 = vmatpush1.msra.mxu0 0.0
    %954 = vmatprep.subr.mxu0 0.0
    %955 = vmatpush1.msra.mxu0 0.0
    %956 = vmatprep.subr.mxu0 0.0
    %957 = vmatpush1.msra.mxu0 0.0
    %958 = vmatprep.subr.mxu0 0.0
    %959 = vmatpush1.msra.mxu0 0.0
    %960 = vmatprep.subr.mxu0 0.0
    %961 = vmatpush1.msra.mxu0 0.0
    %962 = vmatprep.subr.mxu0 0.0
    %963 = vmatpush1.msra.mxu0 0.0
    %964 = vmatprep.subr.mxu0 0.0
    %965 = vmatpush1.msra.mxu0 0.0
    %966 = vmatprep.subr.mxu0 0.0
    %967 = vmatpush1.msra.mxu0 0.0
    %968 = vmatprep.subr.mxu0 0.0
    %969 = vmatpush1.msra.mxu0 0.0
    %970 = vmatprep.subr.mxu0 0.0
    %971 = vmatpush1.msra.mxu0 0.0
    %972 = vmatprep.subr.mxu0 0.0
    %973 = vmatpush1.msra.mxu0 0.0
    %974 = vmatprep.subr.mxu0 0.0
    %975 = vmatpush1.msra.mxu0 0.0
    %976 = vmatprep.subr.mxu0 0.0
    %977 = vmatpush1.msra.mxu0 0.0
    %978 = vmatprep.subr.mxu0 0.0
    %979 = vmatpush1.msra.mxu0 0.0
    %980 = vmatprep.subr.mxu0 0.0
    %981 = vmatpush1.msra.mxu0 0.0
    %982 = vmatprep.subr.mxu0 0.0
    %983 = vmatpush1.msra.mxu0 0.0
    %984 = vmatprep.subr.mxu0 0.0
    %985 = vmatpush1.msra.mxu0 0.0
    %986 = vmatprep.subr.mxu0 0.0
    %987 = vmatpush1.msra.mxu0 0.0
    %988 = vmatprep.subr.mxu0 0.0
    %989 = vmatpush1.msra.mxu0 0.0
    %990 = vmatprep.subr.mxu0 0.0
    %991 = vmatpush1.msra.mxu0 0.0
    %992 = vmatprep.subr.mxu0 0.0
    %993 = vmatpush1.msra.mxu0 0.0
    %994 = vmatprep.mubr.f32.mxu0 0.0
    %995 = vmatmul.mubr.f32.gmra.mrb[0].mxu0 %v41
    %v996 = vpop.f32.mrb[0].mxu0
    %v997 = vadd.f32 0.0, %v996
    %v998 = vpop.f32.mrb[0].mxu0
    %999 = vmatprep.mubr.f32.mxu0 0.0
    %1000 = vmatmul.mubr.f32.gmra.mrb[0].mxu0 %v44
    %v1001 = vpop.f32.mrb[0].mxu0
    %v1002 = vadd.f32 0.0, %v1001
    %v1003 = vpop.f32.mrb[0].mxu0
    %1004 = vmatprep.mubr.f32.mxu0 0.0
    %1005 = vmatmul.mubr.f32.gmra.mrb[0].mxu0 %v47
    %v1006 = vpop.f32.mrb[0].mxu0
    %v1007 = vadd.f32 0.0, %v1006
    %v1008 = vpop.f32.mrb[0].mxu0
    %1009 = vmatprep.mubr.f32.mxu0 0.0
    %1010 = vmatmul.mubr.f32.gmra.mrb[0].mxu0 %v50
    %v1011 = vpop.f32.mrb[0].mxu0
    %v1012 = vadd.f32 0.0, %v1011
    %v1013 = vpop.f32.mrb[0].mxu0
    %1014 = vdwg.mxu0
    %1015 = vmatprep.subr.mxu0 0.0
    %1016 = vmatpush1.msra.mxu0 %v997
    %1017 = vmatprep.subr.mxu0 0.0
    %1018 = vmatpush1.msra.mxu0 %v1002
    %1019 = vmatprep.subr.mxu0 0.0
    %1020 = vmatpush1.msra.mxu0 %v1007
    %1021 = vmatprep.subr.mxu0 0.0
    %1022 = vmatpush1.msra.mxu0 %v1012
    %1023 = vmatprep.subr.mxu0 0.0
    %1024 = vmatpush1.msra.mxu0 0.0
    %1025 = vmatprep.subr.mxu0 0.0
    %1026 = vmatpush1.msra.mxu0 0.0
    %1027 = vmatprep.subr.mxu0 0.0
    %1028 = vmatpush1.msra.mxu0 0.0
    %1029 = vmatprep.subr.mxu0 0.0
    %1030 = vmatpush1.msra.mxu0 0.0
    %1031 = vmatprep.subr.mxu0 0.0
    %1032 = vmatpush1.msra.mxu0 0.0
    %1033 = vmatprep.subr.mxu0 0.0
    %1034 = vmatpush1.msra.mxu0 0.0
    %1035 = vmatprep.subr.mxu0 0.0
    %1036 = vmatpush1.msra.mxu0 0.0
    %1037 = vmatprep.subr.mxu0 0.0
    %1038 = vmatpush1.msra.mxu0 0.0
    %1039 = vmatprep.subr.mxu0 0.0
    %1040 = vmatpush1.msra.mxu0 0.0
    %1041 = vmatprep.subr.mxu0 0.0
    %1042 = vmatpush1.msra.mxu0 0.0
    %1043 = vmatprep.subr.mxu0 0.0
    %1044 = vmatpush1.msra.mxu0 0.0
    %1045 = vmatprep.subr.mxu0 0.0
    %1046 = vmatpush1.msra.mxu0 0.0
    %1047 = vmatprep.subr.mxu0 0.0
    %1048 = vmatpush1.msra.mxu0 0.0
    %1049 = vmatprep.subr.mxu0 0.0
    %1050 = vmatpush1.msra.mxu0 0.0
    %1051 = vmatprep.subr.mxu0 0.0
    %1052 = vmatpush1.msra.mxu0 0.0
    %1053 = vmatprep.subr.mxu0 0.0
    %1054 = vmatpush1.msra.mxu0 0.0
    %1055 = vmatprep.subr.mxu0 0.0
    %1056 = vmatpush1.msra.mxu0 0.0
    %1057 = vmatprep.subr.mxu0 0.0
    %1058 = vmatpush1.msra.mxu0 0.0
    %1059 = vmatprep.subr.mxu0 0.0
    %1060 = vmatpush1.msra.mxu0 0.0
    %1061 = vmatprep.subr.mxu0 0.0
    %1062 = vmatpush1.msra.mxu0 0.0
    %1063 = vmatprep.subr.mxu0 0.0
    %1064 = vmatpush1.msra.mxu0 0.0
    %1065 = vmatprep.subr.mxu0 0.0
    %1066 = vmatpush1.msra.mxu0 0.0
    %1067 = vmatprep.subr.mxu0 0.0
    %1068 = vmatpush1.msra.mxu0 0.0
    %1069 = vmatprep.subr.mxu0 0.0
    %1070 = vmatpush1.msra.mxu0 0.0
    %1071 = vmatprep.subr.mxu0 0.0
    %1072 = vmatpush1.msra.mxu0 0.0
    %1073 = vmatprep.subr.mxu0 0.0
    %1074 = vmatpush1.msra.mxu0 0.0
    %1075 = vmatprep.subr.mxu0 0.0
    %1076 = vmatpush1.msra.mxu0 0.0
    %1077 = vmatprep.subr.mxu0 0.0
    %1078 = vmatpush1.msra.mxu0 0.0
    %1079 = vmatprep.mubr.f32.mxu0 0.0
    %1080 = vmatmul.mubr.f32.gmra.mrb[0].mxu0 %v41
    %v1081 = vpop.f32.mrb[0].mxu0
    %v1082 = vadd.f32 0.0, %v1081
    %v1083 = vpop.f32.mrb[0].mxu0
    %1084 = vmatprep.mubr.f32.mxu0 0.0
    %1085 = vmatmul.mubr.f32.gmra.mrb[0].mxu0 %v44
    %v1086 = vpop.f32.mrb[0].mxu0
    %v1087 = vadd.f32 0.0, %v1086
    %v1088 = vpop.f32.mrb[0].mxu0
    %1089 = vmatprep.mubr.f32.mxu0 0.0
    %1090 = vmatmul.mubr.f32.gmra.mrb[0].mxu0 %v47
    %v1091 = vpop.f32.mrb[0].mxu0
    %v1092 = vadd.f32 0.0, %v1091
    %v1093 = vpop.f32.mrb[0].mxu0
    %1094 = vmatprep.mubr.f32.mxu0 0.0
    %1095 = vmatmul.mubr.f32.gmra.mrb[0].mxu0 %v50
    %v1096 = vpop.f32.mrb[0].mxu0
    %v1097 = vadd.f32 0.0, %v1096
    %v1098 = vpop.f32.mrb[0].mxu0
    %1099 = vdwg.mxu0
    %v1100 = vmul.f32 %v1082, 2.0
    %v1101 = vmul.f32 %v1087, 2.0
    %v1102 = vmul.f32 %v1092, 2.0
    %v1103 = vmul.f32 %v1097, 2.0
    %v1104 = vsub.f32 %v1100, %v926
    %v1105 = vsub.f32 %v1101, %v927
    %v1106 = vsub.f32 %v1102, %v928
    %v1107 = vsub.f32 %v1103, %v929
    %1112 = vrot.lane.b32.xlu0 %v882, 32
    %v1113 = vpop.permute.xlu0 %1112
    %1114 = vrot.lane.b32.xlu0 %v883, 32
    %v1115 = vpop.permute.xlu0 %1114
    %1116 = vrot.lane.b32.xlu0 %v884, 32
    %v1117 = vpop.permute.xlu0 %1116
    %1118 = vrot.lane.b32.xlu0 %v885, 32
    %v1119 = vpop.permute.xlu0 %1118
    %v1125 = vsel %vm39, %v997, 0
    %v1128 = vsel %vm39, %v1002, 0
    %v1131 = vsel %vm39, %v1007, 0
    %v1134 = vsel %vm39, %v1012, 0
    %1136 = vmatprep.subr.mxu0 0.0
    %1137 = vmatpush1.msra.mxu0 %v1113
    %1138 = vmatprep.subr.mxu0 0.0
    %1139 = vmatpush1.msra.mxu0 %v1115
    %1140 = vmatprep.subr.mxu0 0.0
    %1141 = vmatpush1.msra.mxu0 %v1117
    %1142 = vmatprep.subr.mxu0 0.0
    %1143 = vmatpush1.msra.mxu0 %v1119
    %1144 = vmatprep.subr.mxu0 0.0
    %1145 = vmatpush1.msra.mxu0 0.0
    %1146 = vmatprep.subr.mxu0 0.0
    %1147 = vmatpush1.msra.mxu0 0.0
    %1148 = vmatprep.subr.mxu0 0.0
    %1149 = vmatpush1.msra.mxu0 0.0
    %1150 = vmatprep.subr.mxu0 0.0
    %1151 = vmatpush1.msra.mxu0 0.0
    %1152 = vmatprep.subr.mxu0 0.0
    %1153 = vmatpush1.msra.mxu0 0.0
    %1154 = vmatprep.subr.mxu0 0.0
    %1155 = vmatpush1.msra.mxu0 0.0
    %1156 = vmatprep.subr.mxu0 0.0
    %1157 = vmatpush1.msra.mxu0 0.0
    %1158 = vmatprep.subr.mxu0 0.0
    %1159 = vmatpush1.msra.mxu0 0.0
    %1160 = vmatprep.subr.mxu0 0.0
    %1161 = vmatpush1.msra.mxu0 0.0
    %1162 = vmatprep.subr.mxu0 0.0
    %1163 = vmatpush1.msra.mxu0 0.0
    %1164 = vmatprep.subr.mxu0 0.0
    %1165 = vmatpush1.msra.mxu0 0.0
    %1166 = vmatprep.subr.mxu0 0.0
    %1167 = vmatpush1.msra.mxu0 0.0
    %1168 = vmatprep.subr.mxu0 0.0
    %1169 = vmatpush1.msra.mxu0 0.0
    %1170 = vmatprep.subr.mxu0 0.0
    %1171 = vmatpush1.msra.mxu0 0.0
    %1172 = vmatprep.subr.mxu0 0.0
    %1173 = vmatpush1.msra.mxu0 0.0
    %1174 = vmatprep.subr.mxu0 0.0
    %1175 = vmatpush1.msra.mxu0 0.0
    %1176 = vmatprep.subr.mxu0 0.0
    %1177 = vmatpush1.msra.mxu0 0.0
    %1178 = vmatprep.subr.mxu0 0.0
    %1179 = vmatpush1.msra.mxu0 0.0
    %1180 = vmatprep.subr.mxu0 0.0
    %1181 = vmatpush1.msra.mxu0 0.0
    %1182 = vmatprep.subr.mxu0 0.0
    %1183 = vmatpush1.msra.mxu0 0.0
    %1184 = vmatprep.subr.mxu0 0.0
    %1185 = vmatpush1.msra.mxu0 0.0
    %1186 = vmatprep.subr.mxu0 0.0
    %1187 = vmatpush1.msra.mxu0 0.0
    %1188 = vmatprep.subr.mxu0 0.0
    %1189 = vmatpush1.msra.mxu0 0.0
    %1190 = vmatprep.subr.mxu0 0.0
    %1191 = vmatpush1.msra.mxu0 0.0
    %1192 = vmatprep.subr.mxu0 0.0
    %1193 = vmatpush1.msra.mxu0 0.0
    %1194 = vmatprep.subr.mxu0 0.0
    %1195 = vmatpush1.msra.mxu0 0.0
    %1196 = vmatprep.subr.mxu0 0.0
    %1197 = vmatpush1.msra.mxu0 0.0
    %1198 = vmatprep.subr.mxu0 0.0
    %1199 = vmatpush1.msra.mxu0 0.0
    %1200 = vmatprep.mubr.f32.mxu0 0.0
    %1201 = vmatmul.mubr.f32.gmra.mrb[0].mxu0 %v1125
    %v1202 = vpop.f32.mrb[0].mxu0
    %v1203 = vadd.f32 0.0, %v1202
    %v1204 = vpop.f32.mrb[0].mxu0
    %1205 = vmatprep.mubr.f32.mxu0 0.0
    %1206 = vmatmul.mubr.f32.gmra.mrb[0].mxu0 %v1128
    %v1207 = vpop.f32.mrb[0].mxu0
    %v1208 = vadd.f32 0.0, %v1207
    %v1209 = vpop.f32.mrb[0].mxu0
    %1210 = vmatprep.mubr.f32.mxu0 0.0
    %1211 = vmatmul.mubr.f32.gmra.mrb[0].mxu0 %v1131
    %v1212 = vpop.f32.mrb[0].mxu0
    %v1213 = vadd.f32 0.0, %v1212
    %v1214 = vpop.f32.mrb[0].mxu0
    %1215 = vmatprep.mubr.f32.mxu0 0.0
    %1216 = vmatmul.mubr.f32.gmra.mrb[0].mxu0 %v1134
    %v1217 = vpop.f32.mrb[0].mxu0
    %v1218 = vadd.f32 0.0, %v1217
    %v1219 = vpop.f32.mrb[0].mxu0
    %1220 = vdwg.mxu0
    %1225 = vrot.lane.b32.xlu0 %v878, 32
    %v1226 = vpop.permute.xlu0 %1225
    %1227 = vrot.lane.b32.xlu0 %v879, 32
    %v1228 = vpop.permute.xlu0 %1227
    %1229 = vrot.lane.b32.xlu0 %v880, 32
    %v1230 = vpop.permute.xlu0 %1229
    %1231 = vrot.lane.b32.xlu0 %v881, 32
    %v1232 = vpop.permute.xlu0 %1231
    %v1238 = vsel %vm39, %v926, 0
    %v1241 = vsel %vm39, %v927, 0
    %v1244 = vsel %vm39, %v928, 0
    %v1247 = vsel %vm39, %v929, 0
    %1249 = vmatprep.subr.mxu0 0.0
    %1250 = vmatpush1.msra.mxu0 %v1226
    %1251 = vmatprep.subr.mxu0 0.0
    %1252 = vmatpush1.msra.mxu0 %v1228
    %1253 = vmatprep.subr.mxu0 0.0
    %1254 = vmatpush1.msra.mxu0 %v1230
    %1255 = vmatprep.subr.mxu0 0.0
    %1256 = vmatpush1.msra.mxu0 %v1232
    %1257 = vmatprep.subr.mxu0 0.0
    %1258 = vmatpush1.msra.mxu0 0.0
    %1259 = vmatprep.subr.mxu0 0.0
    %1260 = vmatpush1.msra.mxu0 0.0
    %1261 = vmatprep.subr.mxu0 0.0
    %1262 = vmatpush1.msra.mxu0 0.0
    %1263 = vmatprep.subr.mxu0 0.0
    %1264 = vmatpush1.msra.mxu0 0.0
    %1265 = vmatprep.subr.mxu0 0.0
    %1266 = vmatpush1.msra.mxu0 0.0
    %1267 = vmatprep.subr.mxu0 0.0
    %1268 = vmatpush1.msra.mxu0 0.0
    %1269 = vmatprep.subr.mxu0 0.0
    %1270 = vmatpush1.msra.mxu0 0.0
    %1271 = vmatprep.subr.mxu0 0.0
    %1272 = vmatpush1.msra.mxu0 0.0
    %1273 = vmatprep.subr.mxu0 0.0
    %1274 = vmatpush1.msra.mxu0 0.0
    %1275 = vmatprep.subr.mxu0 0.0
    %1276 = vmatpush1.msra.mxu0 0.0
    %1277 = vmatprep.subr.mxu0 0.0
    %1278 = vmatpush1.msra.mxu0 0.0
    %1279 = vmatprep.subr.mxu0 0.0
    %1280 = vmatpush1.msra.mxu0 0.0
    %1281 = vmatprep.subr.mxu0 0.0
    %1282 = vmatpush1.msra.mxu0 0.0
    %1283 = vmatprep.subr.mxu0 0.0
    %1284 = vmatpush1.msra.mxu0 0.0
    %1285 = vmatprep.subr.mxu0 0.0
    %1286 = vmatpush1.msra.mxu0 0.0
    %1287 = vmatprep.subr.mxu0 0.0
    %1288 = vmatpush1.msra.mxu0 0.0
    %1289 = vmatprep.subr.mxu0 0.0
    %1290 = vmatpush1.msra.mxu0 0.0
    %1291 = vmatprep.subr.mxu0 0.0
    %1292 = vmatpush1.msra.mxu0 0.0
    %1293 = vmatprep.subr.mxu0 0.0
    %1294 = vmatpush1.msra.mxu0 0.0
    %1295 = vmatprep.subr.mxu0 0.0
    %1296 = vmatpush1.msra.mxu0 0.0
    %1297 = vmatprep.subr.mxu0 0.0
    %1298 = vmatpush1.msra.mxu0 0.0
    %1299 = vmatprep.subr.mxu0 0.0
    %1300 = vmatpush1.msra.mxu0 0.0
    %1301 = vmatprep.subr.mxu0 0.0
    %1302 = vmatpush1.msra.mxu0 0.0
    %1303 = vmatprep.subr.mxu0 0.0
    %1304 = vmatpush1.msra.mxu0 0.0
    %1305 = vmatprep.subr.mxu0 0.0
    %1306 = vmatpush1.msra.mxu0 0.0
    %1307 = vmatprep.subr.mxu0 0.0
    %1308 = vmatpush1.msra.mxu0 0.0
    %1309 = vmatprep.subr.mxu0 0.0
    %1310 = vmatpush1.msra.mxu0 0.0
    %1311 = vmatprep.subr.mxu0 0.0
    %1312 = vmatpush1.msra.mxu0 0.0
    %1313 = vmatprep.mubr.f32.mxu0 0.0
    %1314 = vmatmul.mubr.f32.gmra.mrb[0].mxu0 %v1238
    %v1315 = vpop.f32.mrb[0].mxu0
    %v1316 = vadd.f32 %v1203, %v1315
    %v1317 = vpop.f32.mrb[0].mxu0
    %1318 = vmatprep.mubr.f32.mxu0 0.0
    %1319 = vmatmul.mubr.f32.gmra.mrb[0].mxu0 %v1241
    %v1320 = vpop.f32.mrb[0].mxu0
    %v1321 = vadd.f32 %v1208, %v1320
    %v1322 = vpop.f32.mrb[0].mxu0
    %1323 = vmatprep.mubr.f32.mxu0 0.0
    %1324 = vmatmul.mubr.f32.gmra.mrb[0].mxu0 %v1244
    %v1325 = vpop.f32.mrb[0].mxu0
    %v1326 = vadd.f32 %v1213, %v1325
    %v1327 = vpop.f32.mrb[0].mxu0
    %1328 = vmatprep.mubr.f32.mxu0 0.0
    %1329 = vmatmul.mubr.f32.gmra.mrb[0].mxu0 %v1247
    %v1330 = vpop.f32.mrb[0].mxu0
    %v1331 = vadd.f32 %v1218, %v1330
    %v1332 = vpop.f32.mrb[0].mxu0
    %1333 = vdwg.mxu0
    %1338 = vrot.lane.b32.xlu0 %v886, 32
    %v1339 = vpop.permute.xlu0 %1338
    %1340 = vrot.lane.b32.xlu0 %v887, 32
    %v1341 = vpop.permute.xlu0 %1340
    %1342 = vrot.lane.b32.xlu0 %v888, 32
    %v1343 = vpop.permute.xlu0 %1342
    %1344 = vrot.lane.b32.xlu0 %v889, 32
    %v1345 = vpop.permute.xlu0 %1344
    %v1351 = vsel %vm39, %v1104, 0
    %v1354 = vsel %vm39, %v1105, 0
    %v1357 = vsel %vm39, %v1106, 0
    %v1360 = vsel %vm39, %v1107, 0
    %1362 = vmatprep.subr.mxu0 0.0
    %1363 = vmatpush1.msra.mxu0 %v1339
    %1364 = vmatprep.subr.mxu0 0.0
    %1365 = vmatpush1.msra.mxu0 %v1341
    %1366 = vmatprep.subr.mxu0 0.0
    %1367 = vmatpush1.msra.mxu0 %v1343
    %1368 = vmatprep.subr.mxu0 0.0
    %1369 = vmatpush1.msra.mxu0 %v1345
    %1370 = vmatprep.subr.mxu0 0.0
    %1371 = vmatpush1.msra.mxu0 0.0
    %1372 = vmatprep.subr.mxu0 0.0
    %1373 = vmatpush1.msra.mxu0 0.0
    %1374 = vmatprep.subr.mxu0 0.0
    %1375 = vmatpush1.msra.mxu0 0.0
    %1376 = vmatprep.subr.mxu0 0.0
    %1377 = vmatpush1.msra.mxu0 0.0
    %1378 = vmatprep.subr.mxu0 0.0
    %1379 = vmatpush1.msra.mxu0 0.0
    %1380 = vmatprep.subr.mxu0 0.0
    %1381 = vmatpush1.msra.mxu0 0.0
    %1382 = vmatprep.subr.mxu0 0.0
    %1383 = vmatpush1.msra.mxu0 0.0
    %1384 = vmatprep.subr.mxu0 0.0
    %1385 = vmatpush1.msra.mxu0 0.0
    %1386 = vmatprep.subr.mxu0 0.0
    %1387 = vmatpush1.msra.mxu0 0.0
    %1388 = vmatprep.subr.mxu0 0.0
    %1389 = vmatpush1.msra.mxu0 0.0
    %1390 = vmatprep.subr.mxu0 0.0
    %1391 = vmatpush1.msra.mxu0 0.0
    %1392 = vmatprep.subr.mxu0 0.0
    %1393 = vmatpush1.msra.mxu0 0.0
    %1394 = vmatprep.subr.mxu0 0.0
    %1395 = vmatpush1.msra.mxu0 0.0
    %1396 = vmatprep.subr.mxu0 0.0
    %1397 = vmatpush1.msra.mxu0 0.0
    %1398 = vmatprep.subr.mxu0 0.0
    %1399 = vmatpush1.msra.mxu0 0.0
    %1400 = vmatprep.subr.mxu0 0.0
    %1401 = vmatpush1.msra.mxu0 0.0
    %1402 = vmatprep.subr.mxu0 0.0
    %1403 = vmatpush1.msra.mxu0 0.0
    %1404 = vmatprep.subr.mxu0 0.0
    %1405 = vmatpush1.msra.mxu0 0.0
    %1406 = vmatprep.subr.mxu0 0.0
    %1407 = vmatpush1.msra.mxu0 0.0
    %1408 = vmatprep.subr.mxu0 0.0
    %1409 = vmatpush1.msra.mxu0 0.0
    %1410 = vmatprep.subr.mxu0 0.0
    %1411 = vmatpush1.msra.mxu0 0.0
    %1412 = vmatprep.subr.mxu0 0.0
    %1413 = vmatpush1.msra.mxu0 0.0
    %1414 = vmatprep.subr.mxu0 0.0
    %1415 = vmatpush1.msra.mxu0 0.0
    %1416 = vmatprep.subr.mxu0 0.0
    %1417 = vmatpush1.msra.mxu0 0.0
    %1418 = vmatprep.subr.mxu0 0.0
    %1419 = vmatpush1.msra.mxu0 0.0
    %1420 = vmatprep.subr.mxu0 0.0
    %1421 = vmatpush1.msra.mxu0 0.0
    %1422 = vmatprep.subr.mxu0 0.0
    %1423 = vmatpush1.msra.mxu0 0.0
    %1424 = vmatprep.subr.mxu0 0.0
    %1425 = vmatpush1.msra.mxu0 0.0
    %1426 = vmatprep.mubr.f32.mxu0 0.0
    %1427 = vmatmul.mubr.f32.gmra.mrb[0].mxu0 %v1351
    %v1428 = vpop.f32.mrb[0].mxu0
    %v1429 = vadd.f32 0.0, %v1428
    %v1430 = vpop.f32.mrb[0].mxu0
    %1431 = vmatprep.mubr.f32.mxu0 0.0
    %1432 = vmatmul.mubr.f32.gmra.mrb[0].mxu0 %v1354
    %v1433 = vpop.f32.mrb[0].mxu0
    %v1434 = vadd.f32 0.0, %v1433
    %v1435 = vpop.f32.mrb[0].mxu0
    %1436 = vmatprep.mubr.f32.mxu0 0.0
    %1437 = vmatmul.mubr.f32.gmra.mrb[0].mxu0 %v1357
    %v1438 = vpop.f32.mrb[0].mxu0
    %v1439 = vadd.f32 0.0, %v1438
    %v1440 = vpop.f32.mrb[0].mxu0
    %1441 = vmatprep.mubr.f32.mxu0 0.0
    %1442 = vmatmul.mubr.f32.gmra.mrb[0].mxu0 %v1360
    %v1443 = vpop.f32.mrb[0].mxu0
    %v1444 = vadd.f32 0.0, %v1443
    %v1445 = vpop.f32.mrb[0].mxu0
    %1446 = vdwg.mxu0
    %v1447 = vadd.f32 %v1316, %v1429
    %v1448 = vadd.f32 %v1321, %v1434
    %v1449 = vadd.f32 %v1326, %v1439
    %v1450 = vadd.f32 %v1331, %v1444
    %1455 = vrot.lane.b32.xlu0 %v1447, 64
    %v1456 = vpop.permute.xlu0 %1455
    %1457 = vrot.lane.b32.xlu0 %v1448, 64
    %v1458 = vpop.permute.xlu0 %1457
    %1459 = vrot.lane.b32.xlu0 %v1449, 64
    %v1460 = vpop.permute.xlu0 %1459
    %1461 = vrot.lane.b32.xlu0 %v1450, 64
    %v1462 = vpop.permute.xlu0 %1461
    %v1467 = vadd.f32 %v546, %v1456
    %v1468 = vadd.f32 %v547, %v1458
    %v1469 = vadd.f32 %v548, %v1460
    %v1470 = vadd.f32 %v549, %v1462
    %v1471 = vtanh.pop %v1467
    %v1472 = vtanh.pop %v1468
    %v1473 = vtanh.pop %v1469
    %v1474 = vtanh.pop %v1470
    %1475 = vrot.lane.b32.xlu0 %v35, 31
    %v1476 = vpop.permute.xlu0 %1475
    %1477 = vrot.lane.b32.xlu0 %v36, 31
    %v1478 = vpop.permute.xlu0 %1477
    %1479 = vrot.lane.b32.xlu0 %v37, 31
    %v1480 = vpop.permute.xlu0 %1479
    %1481 = vrot.lane.b32.xlu0 %v38, 31
    %v1482 = vpop.permute.xlu0 %1481
    %v1487 = vmul.f32 %v907, %v1476
    %v1488 = vmul.f32 %v909, %v1478
    %v1489 = vmul.f32 %v911, %v1480
    %v1490 = vmul.f32 %v913, %v1482
    %v1491 = vsub.f32 1.0, %v907
    %v1492 = vsub.f32 1.0, %v909
    %v1493 = vsub.f32 1.0, %v911
    %v1494 = vsub.f32 1.0, %v913
    %1499 = vrot.lane.b32.xlu0 %v1471, 96
    %v1500 = vpop.permute.xlu0 %1499
    %1501 = vrot.lane.b32.xlu0 %v1472, 96
    %v1502 = vpop.permute.xlu0 %1501
    %1503 = vrot.lane.b32.xlu0 %v1473, 96
    %v1504 = vpop.permute.xlu0 %1503
    %1505 = vrot.lane.b32.xlu0 %v1474, 96
    %v1506 = vpop.permute.xlu0 %1505
    %v1511 = vmul.f32 %v1491, %v1500
    %v1512 = vmul.f32 %v1492, %v1502
    %v1513 = vmul.f32 %v1493, %v1504
    %v1514 = vmul.f32 %v1494, %v1506
    %v1515 = vadd.f32 %v1487, %v1511
    %v1516 = vadd.f32 %v1488, %v1512
    %v1517 = vadd.f32 %v1489, %v1513
    %v1518 = vadd.f32 %v1490, %v1514
    %v1519 = vld [vmem:[%s3] sm:$0xff]
    %v1520 = vld [vmem:[%s3 + $0x8] sm:$0xff]
    %v1521 = vld [vmem:[%s3 + $0x10] sm:$0xff]
    %v1522 = vld [vmem:[%s3 + $0x18] sm:$0xff]
    %v1523 = vld [vmem:[%s3 + $0x20] sm:$0xff]
    %v1524 = vld [vmem:[%s3 + $0x28] sm:$0xff]
    %v1525 = vld [vmem:[%s3 + $0x30] sm:$0xff]
    %v1526 = vld [vmem:[%s3 + $0x38] sm:$0xff]
    %v1527 = vld [vmem:[%s3 + $0x40] sm:$0xff]
    %v1528 = vld [vmem:[%s3 + $0x48] sm:$0xff]
    %v1529 = vld [vmem:[%s3 + $0x50] sm:$0xff]
    %v1530 = vld [vmem:[%s3 + $0x58] sm:$0xff]
    %1535 = vrot.lane.b32.xlu0 %v1515, 96
    %v1536 = vpop.permute.xlu0 %1535
    %1537 = vrot.lane.b32.xlu0 %v1516, 96
    %v1538 = vpop.permute.xlu0 %1537
    %1539 = vrot.lane.b32.xlu0 %v1517, 96
    %v1540 = vpop.permute.xlu0 %1539
    %1541 = vrot.lane.b32.xlu0 %v1518, 96
    %v1542 = vpop.permute.xlu0 %1541
    %1547 = vmatprep.subr.mxu0 0.0
    %1548 = vmatpush1.msra.mxu0 %v1536
    %1549 = vmatprep.subr.mxu0 0.0
    %1550 = vmatpush1.msra.mxu0 %v1538
    %1551 = vmatprep.subr.mxu0 0.0
    %1552 = vmatpush1.msra.mxu0 %v1540
    %1553 = vmatprep.subr.mxu0 0.0
    %1554 = vmatpush1.msra.mxu0 %v1542
    %1555 = vmatprep.subr.mxu0 0.0
    %1556 = vmatpush1.msra.mxu0 0.0
    %1557 = vmatprep.subr.mxu0 0.0
    %1558 = vmatpush1.msra.mxu0 0.0
    %1559 = vmatprep.subr.mxu0 0.0
    %1560 = vmatpush1.msra.mxu0 0.0
    %1561 = vmatprep.subr.mxu0 0.0
    %1562 = vmatpush1.msra.mxu0 0.0
    %1563 = vmatprep.subr.mxu0 0.0
    %1564 = vmatpush1.msra.mxu0 0.0
    %1565 = vmatprep.subr.mxu0 0.0
    %1566 = vmatpush1.msra.mxu0 0.0
    %1567 = vmatprep.subr.mxu0 0.0
    %1568 = vmatpush1.msra.mxu0 0.0
    %1569 = vmatprep.subr.mxu0 0.0
    %1570 = vmatpush1.msra.mxu0 0.0
    %1571 = vmatprep.subr.mxu0 0.0
    %1572 = vmatpush1.msra.mxu0 0.0
    %1573 = vmatprep.subr.mxu0 0.0
    %1574 = vmatpush1.msra.mxu0 0.0
    %1575 = vmatprep.subr.mxu0 0.0
    %1576 = vmatpush1.msra.mxu0 0.0
    %1577 = vmatprep.subr.mxu0 0.0
    %1578 = vmatpush1.msra.mxu0 0.0
    %1579 = vmatprep.subr.mxu0 0.0
    %1580 = vmatpush1.msra.mxu0 0.0
    %1581 = vmatprep.subr.mxu0 0.0
    %1582 = vmatpush1.msra.mxu0 0.0
    %1583 = vmatprep.subr.mxu0 0.0
    %1584 = vmatpush1.msra.mxu0 0.0
    %1585 = vmatprep.subr.mxu0 0.0
    %1586 = vmatpush1.msra.mxu0 0.0
    %1587 = vmatprep.subr.mxu0 0.0
    %1588 = vmatpush1.msra.mxu0 0.0
    %1589 = vmatprep.subr.mxu0 0.0
    %1590 = vmatpush1.msra.mxu0 0.0
    %1591 = vmatprep.subr.mxu0 0.0
    %1592 = vmatpush1.msra.mxu0 0.0
    %1593 = vmatprep.subr.mxu0 0.0
    %1594 = vmatpush1.msra.mxu0 0.0
    %1595 = vmatprep.subr.mxu0 0.0
    %1596 = vmatpush1.msra.mxu0 0.0
    %1597 = vmatprep.subr.mxu0 0.0
    %1598 = vmatpush1.msra.mxu0 0.0
    %1599 = vmatprep.subr.mxu0 0.0
    %1600 = vmatpush1.msra.mxu0 0.0
    %1601 = vmatprep.subr.mxu0 0.0
    %1602 = vmatpush1.msra.mxu0 0.0
    %1603 = vmatprep.subr.mxu0 0.0
    %1604 = vmatpush1.msra.mxu0 0.0
    %1605 = vmatprep.subr.mxu0 0.0
    %1606 = vmatpush1.msra.mxu0 0.0
    %1607 = vmatprep.subr.mxu0 0.0
    %1608 = vmatpush1.msra.mxu0 0.0
    %1609 = vmatprep.subr.mxu0 0.0
    %1610 = vmatpush1.msra.mxu0 0.0
    %1611 = vmatprep.mubr.f32.mxu0 0.0
    %1612 = vmatmul.mubr.f32.gmra.mrb[0].mxu0 %v41
    %v1613 = vpop.f32.mrb[0].mxu0
    %v1614 = vadd.f32 0.0, %v1613
    %v1615 = vpop.f32.mrb[0].mxu0
    %1616 = vmatprep.mubr.f32.mxu0 0.0
    %1617 = vmatmul.mubr.f32.gmra.mrb[0].mxu0 %v44
    %v1618 = vpop.f32.mrb[0].mxu0
    %v1619 = vadd.f32 0.0, %v1618
    %v1620 = vpop.f32.mrb[0].mxu0
    %1621 = vmatprep.mubr.f32.mxu0 0.0
    %1622 = vmatmul.mubr.f32.gmra.mrb[0].mxu0 %v47
    %v1623 = vpop.f32.mrb[0].mxu0
    %v1624 = vadd.f32 0.0, %v1623
    %v1625 = vpop.f32.mrb[0].mxu0
    %1626 = vmatprep.mubr.f32.mxu0 0.0
    %1627 = vmatmul.mubr.f32.gmra.mrb[0].mxu0 %v50
    %v1628 = vpop.f32.mrb[0].mxu0
    %v1629 = vadd.f32 0.0, %v1628
    %v1630 = vpop.f32.mrb[0].mxu0
    %1631 = vdwg.mxu0
    %1632 = vmatprep.subr.mxu0 0.0
    %1633 = vmatpush1.msra.mxu0 %v1614
    %1634 = vmatprep.subr.mxu0 0.0
    %1635 = vmatpush1.msra.mxu0 %v1619
    %1636 = vmatprep.subr.mxu0 0.0
    %1637 = vmatpush1.msra.mxu0 %v1624
    %1638 = vmatprep.subr.mxu0 0.0
    %1639 = vmatpush1.msra.mxu0 %v1629
    %1640 = vmatprep.subr.mxu0 0.0
    %1641 = vmatpush1.msra.mxu0 0.0
    %1642 = vmatprep.subr.mxu0 0.0
    %1643 = vmatpush1.msra.mxu0 0.0
    %1644 = vmatprep.subr.mxu0 0.0
    %1645 = vmatpush1.msra.mxu0 0.0
    %1646 = vmatprep.subr.mxu0 0.0
    %1647 = vmatpush1.msra.mxu0 0.0
    %1648 = vmatprep.subr.mxu0 0.0
    %1649 = vmatpush1.msra.mxu0 0.0
    %1650 = vmatprep.subr.mxu0 0.0
    %1651 = vmatpush1.msra.mxu0 0.0
    %1652 = vmatprep.subr.mxu0 0.0
    %1653 = vmatpush1.msra.mxu0 0.0
    %1654 = vmatprep.subr.mxu0 0.0
    %1655 = vmatpush1.msra.mxu0 0.0
    %1656 = vmatprep.subr.mxu0 0.0
    %1657 = vmatpush1.msra.mxu0 0.0
    %1658 = vmatprep.subr.mxu0 0.0
    %1659 = vmatpush1.msra.mxu0 0.0
    %1660 = vmatprep.subr.mxu0 0.0
    %1661 = vmatpush1.msra.mxu0 0.0
    %1662 = vmatprep.subr.mxu0 0.0
    %1663 = vmatpush1.msra.mxu0 0.0
    %1664 = vmatprep.subr.mxu0 0.0
    %1665 = vmatpush1.msra.mxu0 0.0
    %1666 = vmatprep.subr.mxu0 0.0
    %1667 = vmatpush1.msra.mxu0 0.0
    %1668 = vmatprep.subr.mxu0 0.0
    %1669 = vmatpush1.msra.mxu0 0.0
    %1670 = vmatprep.subr.mxu0 0.0
    %1671 = vmatpush1.msra.mxu0 0.0
    %1672 = vmatprep.subr.mxu0 0.0
    %1673 = vmatpush1.msra.mxu0 0.0
    %1674 = vmatprep.subr.mxu0 0.0
    %1675 = vmatpush1.msra.mxu0 0.0
    %1676 = vmatprep.subr.mxu0 0.0
    %1677 = vmatpush1.msra.mxu0 0.0
    %1678 = vmatprep.subr.mxu0 0.0
    %1679 = vmatpush1.msra.mxu0 0.0
    %1680 = vmatprep.subr.mxu0 0.0
    %1681 = vmatpush1.msra.mxu0 0.0
    %1682 = vmatprep.subr.mxu0 0.0
    %1683 = vmatpush1.msra.mxu0 0.0
    %1684 = vmatprep.subr.mxu0 0.0
    %1685 = vmatpush1.msra.mxu0 0.0
    %1686 = vmatprep.subr.mxu0 0.0
    %1687 = vmatpush1.msra.mxu0 0.0
    %1688 = vmatprep.subr.mxu0 0.0
    %1689 = vmatpush1.msra.mxu0 0.0
    %1690 = vmatprep.subr.mxu0 0.0
    %1691 = vmatpush1.msra.mxu0 0.0
    %1692 = vmatprep.subr.mxu0 0.0
    %1693 = vmatpush1.msra.mxu0 0.0
    %1694 = vmatprep.subr.mxu0 0.0
    %1695 = vmatpush1.msra.mxu0 0.0
    %1696 = vmatprep.mubr.f32.mxu0 0.0
    %1697 = vmatmul.mubr.f32.gmra.mrb[0].mxu0 %v41
    %v1698 = vpop.f32.mrb[0].mxu0
    %v1699 = vadd.f32 0.0, %v1698
    %v1700 = vpop.f32.mrb[0].mxu0
    %1701 = vmatprep.mubr.f32.mxu0 0.0
    %1702 = vmatmul.mubr.f32.gmra.mrb[0].mxu0 %v44
    %v1703 = vpop.f32.mrb[0].mxu0
    %v1704 = vadd.f32 0.0, %v1703
    %v1705 = vpop.f32.mrb[0].mxu0
    %1706 = vmatprep.mubr.f32.mxu0 0.0
    %1707 = vmatmul.mubr.f32.gmra.mrb[0].mxu0 %v47
    %v1708 = vpop.f32.mrb[0].mxu0
    %v1709 = vadd.f32 0.0, %v1708
    %v1710 = vpop.f32.mrb[0].mxu0
    %1711 = vmatprep.mubr.f32.mxu0 0.0
    %1712 = vmatmul.mubr.f32.gmra.mrb[0].mxu0 %v50
    %v1713 = vpop.f32.mrb[0].mxu0
    %v1714 = vadd.f32 0.0, %v1713
    %v1715 = vpop.f32.mrb[0].mxu0
    %1716 = vdwg.mxu0
    %v1717 = vmul.f32 %v1699, 2.0
    %v1718 = vmul.f32 %v1704, 2.0
    %v1719 = vmul.f32 %v1709, 2.0
    %v1720 = vmul.f32 %v1714, 2.0
    %v1721 = vsub.f32 %v1717, %v1536
    %v1722 = vsub.f32 %v1718, %v1538
    %v1723 = vsub.f32 %v1719, %v1540
    %v1724 = vsub.f32 %v1720, %v1542
    %v1726 = vsel %vm39, %v1614, 0
    %v1729 = vsel %vm39, %v1619, 0
    %v1732 = vsel %vm39, %v1624, 0
    %v1735 = vsel %vm39, %v1629, 0
    %1737 = vmatprep.subr.mxu0 0.0
    %1738 = vmatpush1.msra.mxu0 %v1523
    %1739 = vmatprep.subr.mxu0 0.0
    %1740 = vmatpush1.msra.mxu0 %v1524
    %1741 = vmatprep.subr.mxu0 0.0
    %1742 = vmatpush1.msra.mxu0 %v1525
    %1743 = vmatprep.subr.mxu0 0.0
    %1744 = vmatpush1.msra.mxu0 %v1526
    %1745 = vmatprep.subr.mxu0 0.0
    %1746 = vmatpush1.msra.mxu0 0.0
    %1747 = vmatprep.subr.mxu0 0.0
    %1748 = vmatpush1.msra.mxu0 0.0
    %1749 = vmatprep.subr.mxu0 0.0
    %1750 = vmatpush1.msra.mxu0 0.0
    %1751 = vmatprep.subr.mxu0 0.0
    %1752 = vmatpush1.msra.mxu0 0.0
    %1753 = vmatprep.subr.mxu0 0.0
    %1754 = vmatpush1.msra.mxu0 0.0
    %1755 = vmatprep.subr.mxu0 0.0
    %1756 = vmatpush1.msra.mxu0 0.0
    %1757 = vmatprep.subr.mxu0 0.0
    %1758 = vmatpush1.msra.mxu0 0.0
    %1759 = vmatprep.subr.mxu0 0.0
    %1760 = vmatpush1.msra.mxu0 0.0
    %1761 = vmatprep.subr.mxu0 0.0
    %1762 = vmatpush1.msra.mxu0 0.0
    %1763 = vmatprep.subr.mxu0 0.0
    %1764 = vmatpush1.msra.mxu0 0.0
    %1765 = vmatprep.subr.mxu0 0.0
    %1766 = vmatpush1.msra.mxu0 0.0
    %1767 = vmatprep.subr.mxu0 0.0
    %1768 = vmatpush1.msra.mxu0 0.0
    %1769 = vmatprep.subr.mxu0 0.0
    %1770 = vmatpush1.msra.mxu0 0.0
    %1771 = vmatprep.subr.mxu0 0.0
    %1772 = vmatpush1.msra.mxu0 0.0
    %1773 = vmatprep.subr.mxu0 0.0
    %1774 = vmatpush1.msra.mxu0 0.0
    %1775 = vmatprep.subr.mxu0 0.0
    %1776 = vmatpush1.msra.mxu0 0.0
    %1777 = vmatprep.subr.mxu0 0.0
    %1778 = vmatpush1.msra.mxu0 0.0
    %1779 = vmatprep.subr.mxu0 0.0
    %1780 = vmatpush1.msra.mxu0 0.0
    %1781 = vmatprep.subr.mxu0 0.0
    %1782 = vmatpush1.msra.mxu0 0.0
    %1783 = vmatprep.subr.mxu0 0.0
    %1784 = vmatpush1.msra.mxu0 0.0
    %1785 = vmatprep.subr.mxu0 0.0
    %1786 = vmatpush1.msra.mxu0 0.0
    %1787 = vmatprep.subr.mxu0 0.0
    %1788 = vmatpush1.msra.mxu0 0.0
    %1789 = vmatprep.subr.mxu0 0.0
    %1790 = vmatpush1.msra.mxu0 0.0
    %1791 = vmatprep.subr.mxu0 0.0
    %1792 = vmatpush1.msra.mxu0 0.0
    %1793 = vmatprep.subr.mxu0 0.0
    %1794 = vmatpush1.msra.mxu0 0.0
    %1795 = vmatprep.subr.mxu0 0.0
    %1796 = vmatpush1.msra.mxu0 0.0
    %1797 = vmatprep.subr.mxu0 0.0
    %1798 = vmatpush1.msra.mxu0 0.0
    %1799 = vmatprep.subr.mxu0 0.0
    %1800 = vmatpush1.msra.mxu0 0.0
    %1801 = vmatprep.mubr.f32.mxu0 0.0
    %1802 = vmatmul.mubr.f32.gmra.mrb[0].mxu0 %v1726
    %v1803 = vpop.f32.mrb[0].mxu0
    %v1804 = vadd.f32 0.0, %v1803
    %v1805 = vpop.f32.mrb[0].mxu0
    %1806 = vmatprep.mubr.f32.mxu0 0.0
    %1807 = vmatmul.mubr.f32.gmra.mrb[0].mxu0 %v1729
    %v1808 = vpop.f32.mrb[0].mxu0
    %v1809 = vadd.f32 0.0, %v1808
    %v1810 = vpop.f32.mrb[0].mxu0
    %1811 = vmatprep.mubr.f32.mxu0 0.0
    %1812 = vmatmul.mubr.f32.gmra.mrb[0].mxu0 %v1732
    %v1813 = vpop.f32.mrb[0].mxu0
    %v1814 = vadd.f32 0.0, %v1813
    %v1815 = vpop.f32.mrb[0].mxu0
    %1816 = vmatprep.mubr.f32.mxu0 0.0
    %1817 = vmatmul.mubr.f32.gmra.mrb[0].mxu0 %v1735
    %v1818 = vpop.f32.mrb[0].mxu0
    %v1819 = vadd.f32 0.0, %v1818
    %v1820 = vpop.f32.mrb[0].mxu0
    %1821 = vdwg.mxu0
    %v1822 = vsel %vm39, %v1536, 0
    %v1824 = vsel %vm39, %v1538, 0
    %v1826 = vsel %vm39, %v1540, 0
    %v1828 = vsel %vm39, %v1542, 0
    %1830 = vmatprep.subr.mxu0 0.0
    %1831 = vmatpush1.msra.mxu0 %v1519
    %1832 = vmatprep.subr.mxu0 0.0
    %1833 = vmatpush1.msra.mxu0 %v1520
    %1834 = vmatprep.subr.mxu0 0.0
    %1835 = vmatpush1.msra.mxu0 %v1521
    %1836 = vmatprep.subr.mxu0 0.0
    %1837 = vmatpush1.msra.mxu0 %v1522
    %1838 = vmatprep.subr.mxu0 0.0
    %1839 = vmatpush1.msra.mxu0 0.0
    %1840 = vmatprep.subr.mxu0 0.0
    %1841 = vmatpush1.msra.mxu0 0.0
    %1842 = vmatprep.subr.mxu0 0.0
    %1843 = vmatpush1.msra.mxu0 0.0
    %1844 = vmatprep.subr.mxu0 0.0
    %1845 = vmatpush1.msra.mxu0 0.0
    %1846 = vmatprep.subr.mxu0 0.0
    %1847 = vmatpush1.msra.mxu0 0.0
    %1848 = vmatprep.subr.mxu0 0.0
    %1849 = vmatpush1.msra.mxu0 0.0
    %1850 = vmatprep.subr.mxu0 0.0
    %1851 = vmatpush1.msra.mxu0 0.0
    %1852 = vmatprep.subr.mxu0 0.0
    %1853 = vmatpush1.msra.mxu0 0.0
    %1854 = vmatprep.subr.mxu0 0.0
    %1855 = vmatpush1.msra.mxu0 0.0
    %1856 = vmatprep.subr.mxu0 0.0
    %1857 = vmatpush1.msra.mxu0 0.0
    %1858 = vmatprep.subr.mxu0 0.0
    %1859 = vmatpush1.msra.mxu0 0.0
    %1860 = vmatprep.subr.mxu0 0.0
    %1861 = vmatpush1.msra.mxu0 0.0
    %1862 = vmatprep.subr.mxu0 0.0
    %1863 = vmatpush1.msra.mxu0 0.0
    %1864 = vmatprep.subr.mxu0 0.0
    %1865 = vmatpush1.msra.mxu0 0.0
    %1866 = vmatprep.subr.mxu0 0.0
    %1867 = vmatpush1.msra.mxu0 0.0
    %1868 = vmatprep.subr.mxu0 0.0
    %1869 = vmatpush1.msra.mxu0 0.0
    %1870 = vmatprep.subr.mxu0 0.0
    %1871 = vmatpush1.msra.mxu0 0.0
    %1872 = vmatprep.subr.mxu0 0.0
    %1873 = vmatpush1.msra.mxu0 0.0
    %1874 = vmatprep.subr.mxu0 0.0
    %1875 = vmatpush1.msra.mxu0 0.0
    %1876 = vmatprep.subr.mxu0 0.0
    %1877 = vmatpush1.msra.mxu0 0.0
    %1878 = vmatprep.subr.mxu0 0.0
    %1879 = vmatpush1.msra.mxu0 0.0
    %1880 = vmatprep.subr.mxu0 0.0
    %1881 = vmatpush1.msra.mxu0 0.0
    %1882 = vmatprep.subr.mxu0 0.0
    %1883 = vmatpush1.msra.mxu0 0.0
    %1884 = vmatprep.subr.mxu0 0.0
    %1885 = vmatpush1.msra.mxu0 0.0
    %1886 = vmatprep.subr.mxu0 0.0
    %1887 = vmatpush1.msra.mxu0 0.0
    %1888 = vmatprep.subr.mxu0 0.0
    %1889 = vmatpush1.msra.mxu0 0.0
    %1890 = vmatprep.subr.mxu0 0.0
    %1891 = vmatpush1.msra.mxu0 0.0
    %1892 = vmatprep.subr.mxu0 0.0
    %1893 = vmatpush1.msra.mxu0 0.0
    %1894 = vmatprep.mubr.f32.mxu0 0.0
    %1895 = vmatmul.mubr.f32.gmra.mrb[0].mxu0 %v1822
    %v1896 = vpop.f32.mrb[0].mxu0
    %v1897 = vadd.f32 %v1804, %v1896
    %v1898 = vpop.f32.mrb[0].mxu0
    %1899 = vmatprep.mubr.f32.mxu0 0.0
    %1900 = vmatmul.mubr.f32.gmra.mrb[0].mxu0 %v1824
    %v1901 = vpop.f32.mrb[0].mxu0
    %v1902 = vadd.f32 %v1809, %v1901
    %v1903 = vpop.f32.mrb[0].mxu0
    %1904 = vmatprep.mubr.f32.mxu0 0.0
    %1905 = vmatmul.mubr.f32.gmra.mrb[0].mxu0 %v1826
    %v1906 = vpop.f32.mrb[0].mxu0
    %v1907 = vadd.f32 %v1814, %v1906
    %v1908 = vpop.f32.mrb[0].mxu0
    %1909 = vmatprep.mubr.f32.mxu0 0.0
    %1910 = vmatmul.mubr.f32.gmra.mrb[0].mxu0 %v1828
    %v1911 = vpop.f32.mrb[0].mxu0
    %v1912 = vadd.f32 %v1819, %v1911
    %v1913 = vpop.f32.mrb[0].mxu0
    %1914 = vdwg.mxu0
    %v1916 = vsel %vm39, %v1721, 0
    %v1919 = vsel %vm39, %v1722, 0
    %v1922 = vsel %vm39, %v1723, 0
    %v1925 = vsel %vm39, %v1724, 0
    %1927 = vmatprep.subr.mxu0 0.0
    %1928 = vmatpush1.msra.mxu0 %v1527
    %1929 = vmatprep.subr.mxu0 0.0
    %1930 = vmatpush1.msra.mxu0 %v1528
    %1931 = vmatprep.subr.mxu0 0.0
    %1932 = vmatpush1.msra.mxu0 %v1529
    %1933 = vmatprep.subr.mxu0 0.0
    %1934 = vmatpush1.msra.mxu0 %v1530
    %1935 = vmatprep.subr.mxu0 0.0
    %1936 = vmatpush1.msra.mxu0 0.0
    %1937 = vmatprep.subr.mxu0 0.0
    %1938 = vmatpush1.msra.mxu0 0.0
    %1939 = vmatprep.subr.mxu0 0.0
    %1940 = vmatpush1.msra.mxu0 0.0
    %1941 = vmatprep.subr.mxu0 0.0
    %1942 = vmatpush1.msra.mxu0 0.0
    %1943 = vmatprep.subr.mxu0 0.0
    %1944 = vmatpush1.msra.mxu0 0.0
    %1945 = vmatprep.subr.mxu0 0.0
    %1946 = vmatpush1.msra.mxu0 0.0
    %1947 = vmatprep.subr.mxu0 0.0
    %1948 = vmatpush1.msra.mxu0 0.0
    %1949 = vmatprep.subr.mxu0 0.0
    %1950 = vmatpush1.msra.mxu0 0.0
    %1951 = vmatprep.subr.mxu0 0.0
    %1952 = vmatpush1.msra.mxu0 0.0
    %1953 = vmatprep.subr.mxu0 0.0
    %1954 = vmatpush1.msra.mxu0 0.0
    %1955 = vmatprep.subr.mxu0 0.0
    %1956 = vmatpush1.msra.mxu0 0.0
    %1957 = vmatprep.subr.mxu0 0.0
    %1958 = vmatpush1.msra.mxu0 0.0
    %1959 = vmatprep.subr.mxu0 0.0
    %1960 = vmatpush1.msra.mxu0 0.0
    %1961 = vmatprep.subr.mxu0 0.0
    %1962 = vmatpush1.msra.mxu0 0.0
    %1963 = vmatprep.subr.mxu0 0.0
    %1964 = vmatpush1.msra.mxu0 0.0
    %1965 = vmatprep.subr.mxu0 0.0
    %1966 = vmatpush1.msra.mxu0 0.0
    %1967 = vmatprep.subr.mxu0 0.0
    %1968 = vmatpush1.msra.mxu0 0.0
    %1969 = vmatprep.subr.mxu0 0.0
    %1970 = vmatpush1.msra.mxu0 0.0
    %1971 = vmatprep.subr.mxu0 0.0
    %1972 = vmatpush1.msra.mxu0 0.0
    %1973 = vmatprep.subr.mxu0 0.0
    %1974 = vmatpush1.msra.mxu0 0.0
    %1975 = vmatprep.subr.mxu0 0.0
    %1976 = vmatpush1.msra.mxu0 0.0
    %1977 = vmatprep.subr.mxu0 0.0
    %1978 = vmatpush1.msra.mxu0 0.0
    %1979 = vmatprep.subr.mxu0 0.0
    %1980 = vmatpush1.msra.mxu0 0.0
    %1981 = vmatprep.subr.mxu0 0.0
    %1982 = vmatpush1.msra.mxu0 0.0
    %1983 = vmatprep.subr.mxu0 0.0
    %1984 = vmatpush1.msra.mxu0 0.0
    %1985 = vmatprep.subr.mxu0 0.0
    %1986 = vmatpush1.msra.mxu0 0.0
    %1987 = vmatprep.subr.mxu0 0.0
    %1988 = vmatpush1.msra.mxu0 0.0
    %1989 = vmatprep.subr.mxu0 0.0
    %1990 = vmatpush1.msra.mxu0 0.0
    %1991 = vmatprep.mubr.f32.mxu0 0.0
    %1992 = vmatmul.mubr.f32.gmra.mrb[0].mxu0 %v1916
    %v1993 = vpop.f32.mrb[0].mxu0
    %v1994 = vadd.f32 0.0, %v1993
    %v1995 = vpop.f32.mrb[0].mxu0
    %1996 = vmatprep.mubr.f32.mxu0 0.0
    %1997 = vmatmul.mubr.f32.gmra.mrb[0].mxu0 %v1919
    %v1998 = vpop.f32.mrb[0].mxu0
    %v1999 = vadd.f32 0.0, %v1998
    %v2000 = vpop.f32.mrb[0].mxu0
    %2001 = vmatprep.mubr.f32.mxu0 0.0
    %2002 = vmatmul.mubr.f32.gmra.mrb[0].mxu0 %v1922
    %v2003 = vpop.f32.mrb[0].mxu0
    %v2004 = vadd.f32 0.0, %v2003
    %v2005 = vpop.f32.mrb[0].mxu0
    %2006 = vmatprep.mubr.f32.mxu0 0.0
    %2007 = vmatmul.mubr.f32.gmra.mrb[0].mxu0 %v1925
    %v2008 = vpop.f32.mrb[0].mxu0
    %v2009 = vadd.f32 0.0, %v2008
    %v2010 = vpop.f32.mrb[0].mxu0
    %2011 = vdwg.mxu0
    %v2012 = vadd.f32 %v1897, %v1994
    %v2013 = vadd.f32 %v1902, %v1999
    %v2014 = vadd.f32 %v1907, %v2004
    %v2015 = vadd.f32 %v1912, %v2009
    %v2016 = vadd.f32 %v874, %v2012
    %v2017 = vadd.f32 %v875, %v2013
    %v2018 = vadd.f32 %v876, %v2014
    %v2019 = vadd.f32 %v877, %v2015
    %v2020 = vxor.u32 %v2016, 2147483648
    %v2021 = vxor.u32 %v2017, 2147483648
    %v2022 = vxor.u32 %v2018, 2147483648
    %v2023 = vxor.u32 %v2019, 2147483648
    %v2024 = vmul.f32 %v2020, 1.442695
    %v2025 = vpow.pop %v2024
    %v2026 = vmul.f32 %v2021, 1.442695
    %v2027 = vpow.pop %v2026
    %v2028 = vmul.f32 %v2022, 1.442695
    %v2029 = vpow.pop %v2028
    %v2030 = vmul.f32 %v2023, 1.442695
    %v2031 = vpow.pop %v2030
    %v2032 = vadd.f32 %v2025, 1.0
    %v2033 = vadd.f32 %v2027, 1.0
    %v2034 = vadd.f32 %v2029, 1.0
    %v2035 = vadd.f32 %v2031, 1.0
    %v2036 = vrcp.pop %v2032
    %v2037 = vmul.f32 1.0, %v2036
    %v2038 = vrcp.pop %v2033
    %v2039 = vmul.f32 1.0, %v2038
    %v2040 = vrcp.pop %v2034
    %v2041 = vmul.f32 1.0, %v2040
    %v2042 = vrcp.pop %v2035
    %v2043 = vmul.f32 1.0, %v2042
    %v2048 = vmul.f32 %v2037, %v665
    %v2049 = vmul.f32 %v2039, %v667
    %v2050 = vmul.f32 %v2041, %v669
    %v2051 = vmul.f32 %v2043, %v671
    %2052 = vmatprep.subr.mxu0 0.0
    %2053 = vmatpush1.msra.mxu0 %v2048
    %2054 = vmatprep.subr.mxu0 0.0
    %2055 = vmatpush1.msra.mxu0 %v2049
    %2056 = vmatprep.subr.mxu0 0.0
    %2057 = vmatpush1.msra.mxu0 %v2050
    %2058 = vmatprep.subr.mxu0 0.0
    %2059 = vmatpush1.msra.mxu0 %v2051
    %2060 = vmatprep.subr.mxu0 0.0
    %2061 = vmatpush1.msra.mxu0 0.0
    %2062 = vmatprep.subr.mxu0 0.0
    %2063 = vmatpush1.msra.mxu0 0.0
    %2064 = vmatprep.subr.mxu0 0.0
    %2065 = vmatpush1.msra.mxu0 0.0
    %2066 = vmatprep.subr.mxu0 0.0
    %2067 = vmatpush1.msra.mxu0 0.0
    %2068 = vmatprep.subr.mxu0 0.0
    %2069 = vmatpush1.msra.mxu0 0.0
    %2070 = vmatprep.subr.mxu0 0.0
    %2071 = vmatpush1.msra.mxu0 0.0
    %2072 = vmatprep.subr.mxu0 0.0
    %2073 = vmatpush1.msra.mxu0 0.0
    %2074 = vmatprep.subr.mxu0 0.0
    %2075 = vmatpush1.msra.mxu0 0.0
    %2076 = vmatprep.subr.mxu0 0.0
    %2077 = vmatpush1.msra.mxu0 0.0
    %2078 = vmatprep.subr.mxu0 0.0
    %2079 = vmatpush1.msra.mxu0 0.0
    %2080 = vmatprep.subr.mxu0 0.0
    %2081 = vmatpush1.msra.mxu0 0.0
    %2082 = vmatprep.subr.mxu0 0.0
    %2083 = vmatpush1.msra.mxu0 0.0
    %2084 = vmatprep.subr.mxu0 0.0
    %2085 = vmatpush1.msra.mxu0 0.0
    %2086 = vmatprep.subr.mxu0 0.0
    %2087 = vmatpush1.msra.mxu0 0.0
    %2088 = vmatprep.subr.mxu0 0.0
    %2089 = vmatpush1.msra.mxu0 0.0
    %2090 = vmatprep.subr.mxu0 0.0
    %2091 = vmatpush1.msra.mxu0 0.0
    %2092 = vmatprep.subr.mxu0 0.0
    %2093 = vmatpush1.msra.mxu0 0.0
    %2094 = vmatprep.subr.mxu0 0.0
    %2095 = vmatpush1.msra.mxu0 0.0
    %2096 = vmatprep.subr.mxu0 0.0
    %2097 = vmatpush1.msra.mxu0 0.0
    %2098 = vmatprep.subr.mxu0 0.0
    %2099 = vmatpush1.msra.mxu0 0.0
    %2100 = vmatprep.subr.mxu0 0.0
    %2101 = vmatpush1.msra.mxu0 0.0
    %2102 = vmatprep.subr.mxu0 0.0
    %2103 = vmatpush1.msra.mxu0 0.0
    %2104 = vmatprep.subr.mxu0 0.0
    %2105 = vmatpush1.msra.mxu0 0.0
    %2106 = vmatprep.subr.mxu0 0.0
    %2107 = vmatpush1.msra.mxu0 0.0
    %2108 = vmatprep.subr.mxu0 0.0
    %2109 = vmatpush1.msra.mxu0 0.0
    %2110 = vmatprep.subr.mxu0 0.0
    %2111 = vmatpush1.msra.mxu0 0.0
    %2112 = vmatprep.subr.mxu0 0.0
    %2113 = vmatpush1.msra.mxu0 0.0
    %2114 = vmatprep.subr.mxu0 0.0
    %2115 = vmatpush1.msra.mxu0 0.0
    %2116 = vmatprep.mubr.f32.mxu0 0.0
    %2117 = vmatmul.mubr.f32.gmra.mrb[0].mxu0 %v41
    %v2118 = vpop.f32.mrb[0].mxu0
    %v2119 = vadd.f32 0.0, %v2118
    %v2120 = vpop.f32.mrb[0].mxu0
    %2121 = vmatprep.mubr.f32.mxu0 0.0
    %2122 = vmatmul.mubr.f32.gmra.mrb[0].mxu0 %v44
    %v2123 = vpop.f32.mrb[0].mxu0
    %v2124 = vadd.f32 0.0, %v2123
    %v2125 = vpop.f32.mrb[0].mxu0
    %2126 = vmatprep.mubr.f32.mxu0 0.0
    %2127 = vmatmul.mubr.f32.gmra.mrb[0].mxu0 %v47
    %v2128 = vpop.f32.mrb[0].mxu0
    %v2129 = vadd.f32 0.0, %v2128
    %v2130 = vpop.f32.mrb[0].mxu0
    %2131 = vmatprep.mubr.f32.mxu0 0.0
    %2132 = vmatmul.mubr.f32.gmra.mrb[0].mxu0 %v50
    %v2133 = vpop.f32.mrb[0].mxu0
    %v2134 = vadd.f32 0.0, %v2133
    %v2135 = vpop.f32.mrb[0].mxu0
    %2136 = vdwg.mxu0
    %2137 = vmatprep.subr.mxu0 0.0
    %2138 = vmatpush1.msra.mxu0 %v2119
    %2139 = vmatprep.subr.mxu0 0.0
    %2140 = vmatpush1.msra.mxu0 %v2124
    %2141 = vmatprep.subr.mxu0 0.0
    %2142 = vmatpush1.msra.mxu0 %v2129
    %2143 = vmatprep.subr.mxu0 0.0
    %2144 = vmatpush1.msra.mxu0 %v2134
    %2145 = vmatprep.subr.mxu0 0.0
    %2146 = vmatpush1.msra.mxu0 0.0
    %2147 = vmatprep.subr.mxu0 0.0
    %2148 = vmatpush1.msra.mxu0 0.0
    %2149 = vmatprep.subr.mxu0 0.0
    %2150 = vmatpush1.msra.mxu0 0.0
    %2151 = vmatprep.subr.mxu0 0.0
    %2152 = vmatpush1.msra.mxu0 0.0
    %2153 = vmatprep.subr.mxu0 0.0
    %2154 = vmatpush1.msra.mxu0 0.0
    %2155 = vmatprep.subr.mxu0 0.0
    %2156 = vmatpush1.msra.mxu0 0.0
    %2157 = vmatprep.subr.mxu0 0.0
    %2158 = vmatpush1.msra.mxu0 0.0
    %2159 = vmatprep.subr.mxu0 0.0
    %2160 = vmatpush1.msra.mxu0 0.0
    %2161 = vmatprep.subr.mxu0 0.0
    %2162 = vmatpush1.msra.mxu0 0.0
    %2163 = vmatprep.subr.mxu0 0.0
    %2164 = vmatpush1.msra.mxu0 0.0
    %2165 = vmatprep.subr.mxu0 0.0
    %2166 = vmatpush1.msra.mxu0 0.0
    %2167 = vmatprep.subr.mxu0 0.0
    %2168 = vmatpush1.msra.mxu0 0.0
    %2169 = vmatprep.subr.mxu0 0.0
    %2170 = vmatpush1.msra.mxu0 0.0
    %2171 = vmatprep.subr.mxu0 0.0
    %2172 = vmatpush1.msra.mxu0 0.0
    %2173 = vmatprep.subr.mxu0 0.0
    %2174 = vmatpush1.msra.mxu0 0.0
    %2175 = vmatprep.subr.mxu0 0.0
    %2176 = vmatpush1.msra.mxu0 0.0
    %2177 = vmatprep.subr.mxu0 0.0
    %2178 = vmatpush1.msra.mxu0 0.0
    %2179 = vmatprep.subr.mxu0 0.0
    %2180 = vmatpush1.msra.mxu0 0.0
    %2181 = vmatprep.subr.mxu0 0.0
    %2182 = vmatpush1.msra.mxu0 0.0
    %2183 = vmatprep.subr.mxu0 0.0
    %2184 = vmatpush1.msra.mxu0 0.0
    %2185 = vmatprep.subr.mxu0 0.0
    %2186 = vmatpush1.msra.mxu0 0.0
    %2187 = vmatprep.subr.mxu0 0.0
    %2188 = vmatpush1.msra.mxu0 0.0
    %2189 = vmatprep.subr.mxu0 0.0
    %2190 = vmatpush1.msra.mxu0 0.0
    %2191 = vmatprep.subr.mxu0 0.0
    %2192 = vmatpush1.msra.mxu0 0.0
    %2193 = vmatprep.subr.mxu0 0.0
    %2194 = vmatpush1.msra.mxu0 0.0
    %2195 = vmatprep.subr.mxu0 0.0
    %2196 = vmatpush1.msra.mxu0 0.0
    %2197 = vmatprep.subr.mxu0 0.0
    %2198 = vmatpush1.msra.mxu0 0.0
    %2199 = vmatprep.subr.mxu0 0.0
    %2200 = vmatpush1.msra.mxu0 0.0
    %2201 = vmatprep.mubr.f32.mxu0 0.0
    %2202 = vmatmul.mubr.f32.gmra.mrb[0].mxu0 %v41
    %v2203 = vpop.f32.mrb[0].mxu0
    %v2204 = vadd.f32 0.0, %v2203
    %v2205 = vpop.f32.mrb[0].mxu0
    %2206 = vmatprep.mubr.f32.mxu0 0.0
    %2207 = vmatmul.mubr.f32.gmra.mrb[0].mxu0 %v44
    %v2208 = vpop.f32.mrb[0].mxu0
    %v2209 = vadd.f32 0.0, %v2208
    %v2210 = vpop.f32.mrb[0].mxu0
    %2211 = vmatprep.mubr.f32.mxu0 0.0
    %2212 = vmatmul.mubr.f32.gmra.mrb[0].mxu0 %v47
    %v2213 = vpop.f32.mrb[0].mxu0
    %v2214 = vadd.f32 0.0, %v2213
    %v2215 = vpop.f32.mrb[0].mxu0
    %2216 = vmatprep.mubr.f32.mxu0 0.0
    %2217 = vmatmul.mubr.f32.gmra.mrb[0].mxu0 %v50
    %v2218 = vpop.f32.mrb[0].mxu0
    %v2219 = vadd.f32 0.0, %v2218
    %v2220 = vpop.f32.mrb[0].mxu0
    %2221 = vdwg.mxu0
    %v2222 = vmul.f32 %v2204, 2.0
    %v2223 = vmul.f32 %v2209, 2.0
    %v2224 = vmul.f32 %v2214, 2.0
    %v2225 = vmul.f32 %v2219, 2.0
    %v2226 = vsub.f32 %v2222, %v2048
    %v2227 = vsub.f32 %v2223, %v2049
    %v2228 = vsub.f32 %v2224, %v2050
    %v2229 = vsub.f32 %v2225, %v2051
    %2234 = vrot.lane.b32.xlu0 %v1523, 32
    %v2235 = vpop.permute.xlu0 %2234
    %2236 = vrot.lane.b32.xlu0 %v1524, 32
    %v2237 = vpop.permute.xlu0 %2236
    %2238 = vrot.lane.b32.xlu0 %v1525, 32
    %v2239 = vpop.permute.xlu0 %2238
    %2240 = vrot.lane.b32.xlu0 %v1526, 32
    %v2241 = vpop.permute.xlu0 %2240
    %v2247 = vsel %vm39, %v2119, 0
    %v2250 = vsel %vm39, %v2124, 0
    %v2253 = vsel %vm39, %v2129, 0
    %v2256 = vsel %vm39, %v2134, 0
    %2258 = vmatprep.subr.mxu0 0.0
    %2259 = vmatpush1.msra.mxu0 %v2235
    %2260 = vmatprep.subr.mxu0 0.0
    %2261 = vmatpush1.msra.mxu0 %v2237
    %2262 = vmatprep.subr.mxu0 0.0
    %2263 = vmatpush1.msra.mxu0 %v2239
    %2264 = vmatprep.subr.mxu0 0.0
    %2265 = vmatpush1.msra.mxu0 %v2241
    %2266 = vmatprep.subr.mxu0 0.0
    %2267 = vmatpush1.msra.mxu0 0.0
    %2268 = vmatprep.subr.mxu0 0.0
    %2269 = vmatpush1.msra.mxu0 0.0
    %2270 = vmatprep.subr.mxu0 0.0
    %2271 = vmatpush1.msra.mxu0 0.0
    %2272 = vmatprep.subr.mxu0 0.0
    %2273 = vmatpush1.msra.mxu0 0.0
    %2274 = vmatprep.subr.mxu0 0.0
    %2275 = vmatpush1.msra.mxu0 0.0
    %2276 = vmatprep.subr.mxu0 0.0
    %2277 = vmatpush1.msra.mxu0 0.0
    %2278 = vmatprep.subr.mxu0 0.0
    %2279 = vmatpush1.msra.mxu0 0.0
    %2280 = vmatprep.subr.mxu0 0.0
    %2281 = vmatpush1.msra.mxu0 0.0
    %2282 = vmatprep.subr.mxu0 0.0
    %2283 = vmatpush1.msra.mxu0 0.0
    %2284 = vmatprep.subr.mxu0 0.0
    %2285 = vmatpush1.msra.mxu0 0.0
    %2286 = vmatprep.subr.mxu0 0.0
    %2287 = vmatpush1.msra.mxu0 0.0
    %2288 = vmatprep.subr.mxu0 0.0
    %2289 = vmatpush1.msra.mxu0 0.0
    %2290 = vmatprep.subr.mxu0 0.0
    %2291 = vmatpush1.msra.mxu0 0.0
    %2292 = vmatprep.subr.mxu0 0.0
    %2293 = vmatpush1.msra.mxu0 0.0
    %2294 = vmatprep.subr.mxu0 0.0
    %2295 = vmatpush1.msra.mxu0 0.0
    %2296 = vmatprep.subr.mxu0 0.0
    %2297 = vmatpush1.msra.mxu0 0.0
    %2298 = vmatprep.subr.mxu0 0.0
    %2299 = vmatpush1.msra.mxu0 0.0
    %2300 = vmatprep.subr.mxu0 0.0
    %2301 = vmatpush1.msra.mxu0 0.0
    %2302 = vmatprep.subr.mxu0 0.0
    %2303 = vmatpush1.msra.mxu0 0.0
    %2304 = vmatprep.subr.mxu0 0.0
    %2305 = vmatpush1.msra.mxu0 0.0
    %2306 = vmatprep.subr.mxu0 0.0
    %2307 = vmatpush1.msra.mxu0 0.0
    %2308 = vmatprep.subr.mxu0 0.0
    %2309 = vmatpush1.msra.mxu0 0.0
    %2310 = vmatprep.subr.mxu0 0.0
    %2311 = vmatpush1.msra.mxu0 0.0
    %2312 = vmatprep.subr.mxu0 0.0
    %2313 = vmatpush1.msra.mxu0 0.0
    %2314 = vmatprep.subr.mxu0 0.0
    %2315 = vmatpush1.msra.mxu0 0.0
    %2316 = vmatprep.subr.mxu0 0.0
    %2317 = vmatpush1.msra.mxu0 0.0
    %2318 = vmatprep.subr.mxu0 0.0
    %2319 = vmatpush1.msra.mxu0 0.0
    %2320 = vmatprep.subr.mxu0 0.0
    %2321 = vmatpush1.msra.mxu0 0.0
    %2322 = vmatprep.mubr.f32.mxu0 0.0
    %2323 = vmatmul.mubr.f32.gmra.mrb[0].mxu0 %v2247
    %v2324 = vpop.f32.mrb[0].mxu0
    %v2325 = vadd.f32 0.0, %v2324
    %v2326 = vpop.f32.mrb[0].mxu0
    %2327 = vmatprep.mubr.f32.mxu0 0.0
    %2328 = vmatmul.mubr.f32.gmra.mrb[0].mxu0 %v2250
    %v2329 = vpop.f32.mrb[0].mxu0
    %v2330 = vadd.f32 0.0, %v2329
    %v2331 = vpop.f32.mrb[0].mxu0
    %2332 = vmatprep.mubr.f32.mxu0 0.0
    %2333 = vmatmul.mubr.f32.gmra.mrb[0].mxu0 %v2253
    %v2334 = vpop.f32.mrb[0].mxu0
    %v2335 = vadd.f32 0.0, %v2334
    %v2336 = vpop.f32.mrb[0].mxu0
    %2337 = vmatprep.mubr.f32.mxu0 0.0
    %2338 = vmatmul.mubr.f32.gmra.mrb[0].mxu0 %v2256
    %v2339 = vpop.f32.mrb[0].mxu0
    %v2340 = vadd.f32 0.0, %v2339
    %v2341 = vpop.f32.mrb[0].mxu0
    %2342 = vdwg.mxu0
    %2347 = vrot.lane.b32.xlu0 %v1519, 32
    %v2348 = vpop.permute.xlu0 %2347
    %2349 = vrot.lane.b32.xlu0 %v1520, 32
    %v2350 = vpop.permute.xlu0 %2349
    %2351 = vrot.lane.b32.xlu0 %v1521, 32
    %v2352 = vpop.permute.xlu0 %2351
    %2353 = vrot.lane.b32.xlu0 %v1522, 32
    %v2354 = vpop.permute.xlu0 %2353
    %v2360 = vsel %vm39, %v2048, 0
    %v2363 = vsel %vm39, %v2049, 0
    %v2366 = vsel %vm39, %v2050, 0
    %v2369 = vsel %vm39, %v2051, 0
    %2371 = vmatprep.subr.mxu0 0.0
    %2372 = vmatpush1.msra.mxu0 %v2348
    %2373 = vmatprep.subr.mxu0 0.0
    %2374 = vmatpush1.msra.mxu0 %v2350
    %2375 = vmatprep.subr.mxu0 0.0
    %2376 = vmatpush1.msra.mxu0 %v2352
    %2377 = vmatprep.subr.mxu0 0.0
    %2378 = vmatpush1.msra.mxu0 %v2354
    %2379 = vmatprep.subr.mxu0 0.0
    %2380 = vmatpush1.msra.mxu0 0.0
    %2381 = vmatprep.subr.mxu0 0.0
    %2382 = vmatpush1.msra.mxu0 0.0
    %2383 = vmatprep.subr.mxu0 0.0
    %2384 = vmatpush1.msra.mxu0 0.0
    %2385 = vmatprep.subr.mxu0 0.0
    %2386 = vmatpush1.msra.mxu0 0.0
    %2387 = vmatprep.subr.mxu0 0.0
    %2388 = vmatpush1.msra.mxu0 0.0
    %2389 = vmatprep.subr.mxu0 0.0
    %2390 = vmatpush1.msra.mxu0 0.0
    %2391 = vmatprep.subr.mxu0 0.0
    %2392 = vmatpush1.msra.mxu0 0.0
    %2393 = vmatprep.subr.mxu0 0.0
    %2394 = vmatpush1.msra.mxu0 0.0
    %2395 = vmatprep.subr.mxu0 0.0
    %2396 = vmatpush1.msra.mxu0 0.0
    %2397 = vmatprep.subr.mxu0 0.0
    %2398 = vmatpush1.msra.mxu0 0.0
    %2399 = vmatprep.subr.mxu0 0.0
    %2400 = vmatpush1.msra.mxu0 0.0
    %2401 = vmatprep.subr.mxu0 0.0
    %2402 = vmatpush1.msra.mxu0 0.0
    %2403 = vmatprep.subr.mxu0 0.0
    %2404 = vmatpush1.msra.mxu0 0.0
    %2405 = vmatprep.subr.mxu0 0.0
    %2406 = vmatpush1.msra.mxu0 0.0
    %2407 = vmatprep.subr.mxu0 0.0
    %2408 = vmatpush1.msra.mxu0 0.0
    %2409 = vmatprep.subr.mxu0 0.0
    %2410 = vmatpush1.msra.mxu0 0.0
    %2411 = vmatprep.subr.mxu0 0.0
    %2412 = vmatpush1.msra.mxu0 0.0
    %2413 = vmatprep.subr.mxu0 0.0
    %2414 = vmatpush1.msra.mxu0 0.0
    %2415 = vmatprep.subr.mxu0 0.0
    %2416 = vmatpush1.msra.mxu0 0.0
    %2417 = vmatprep.subr.mxu0 0.0
    %2418 = vmatpush1.msra.mxu0 0.0
    %2419 = vmatprep.subr.mxu0 0.0
    %2420 = vmatpush1.msra.mxu0 0.0
    %2421 = vmatprep.subr.mxu0 0.0
    %2422 = vmatpush1.msra.mxu0 0.0
    %2423 = vmatprep.subr.mxu0 0.0
    %2424 = vmatpush1.msra.mxu0 0.0
    %2425 = vmatprep.subr.mxu0 0.0
    %2426 = vmatpush1.msra.mxu0 0.0
    %2427 = vmatprep.subr.mxu0 0.0
    %2428 = vmatpush1.msra.mxu0 0.0
    %2429 = vmatprep.subr.mxu0 0.0
    %2430 = vmatpush1.msra.mxu0 0.0
    %2431 = vmatprep.subr.mxu0 0.0
    %2432 = vmatpush1.msra.mxu0 0.0
    %2433 = vmatprep.subr.mxu0 0.0
    %2434 = vmatpush1.msra.mxu0 0.0
    %2435 = vmatprep.mubr.f32.mxu0 0.0
    %2436 = vmatmul.mubr.f32.gmra.mrb[0].mxu0 %v2360
    %v2437 = vpop.f32.mrb[0].mxu0
    %v2438 = vadd.f32 %v2325, %v2437
    %v2439 = vpop.f32.mrb[0].mxu0
    %2440 = vmatprep.mubr.f32.mxu0 0.0
    %2441 = vmatmul.mubr.f32.gmra.mrb[0].mxu0 %v2363
    %v2442 = vpop.f32.mrb[0].mxu0
    %v2443 = vadd.f32 %v2330, %v2442
    %v2444 = vpop.f32.mrb[0].mxu0
    %2445 = vmatprep.mubr.f32.mxu0 0.0
    %2446 = vmatmul.mubr.f32.gmra.mrb[0].mxu0 %v2366
    %v2447 = vpop.f32.mrb[0].mxu0
    %v2448 = vadd.f32 %v2335, %v2447
    %v2449 = vpop.f32.mrb[0].mxu0
    %2450 = vmatprep.mubr.f32.mxu0 0.0
    %2451 = vmatmul.mubr.f32.gmra.mrb[0].mxu0 %v2369
    %v2452 = vpop.f32.mrb[0].mxu0
    %v2453 = vadd.f32 %v2340, %v2452
    %v2454 = vpop.f32.mrb[0].mxu0
    %2455 = vdwg.mxu0
    %2460 = vrot.lane.b32.xlu0 %v1527, 32
    %v2461 = vpop.permute.xlu0 %2460
    %2462 = vrot.lane.b32.xlu0 %v1528, 32
    %v2463 = vpop.permute.xlu0 %2462
    %2464 = vrot.lane.b32.xlu0 %v1529, 32
    %v2465 = vpop.permute.xlu0 %2464
    %2466 = vrot.lane.b32.xlu0 %v1530, 32
    %v2467 = vpop.permute.xlu0 %2466
    %v2473 = vsel %vm39, %v2226, 0
    %v2476 = vsel %vm39, %v2227, 0
    %v2479 = vsel %vm39, %v2228, 0
    %v2482 = vsel %vm39, %v2229, 0
    %2484 = vmatprep.subr.mxu0 0.0
    %2485 = vmatpush1.msra.mxu0 %v2461
    %2486 = vmatprep.subr.mxu0 0.0
    %2487 = vmatpush1.msra.mxu0 %v2463
    %2488 = vmatprep.subr.mxu0 0.0
    %2489 = vmatpush1.msra.mxu0 %v2465
    %2490 = vmatprep.subr.mxu0 0.0
    %2491 = vmatpush1.msra.mxu0 %v2467
    %2492 = vmatprep.subr.mxu0 0.0
    %2493 = vmatpush1.msra.mxu0 0.0
    %2494 = vmatprep.subr.mxu0 0.0
    %2495 = vmatpush1.msra.mxu0 0.0
    %2496 = vmatprep.subr.mxu0 0.0
    %2497 = vmatpush1.msra.mxu0 0.0
    %2498 = vmatprep.subr.mxu0 0.0
    %2499 = vmatpush1.msra.mxu0 0.0
    %2500 = vmatprep.subr.mxu0 0.0
    %2501 = vmatpush1.msra.mxu0 0.0
    %2502 = vmatprep.subr.mxu0 0.0
    %2503 = vmatpush1.msra.mxu0 0.0
    %2504 = vmatprep.subr.mxu0 0.0
    %2505 = vmatpush1.msra.mxu0 0.0
    %2506 = vmatprep.subr.mxu0 0.0
    %2507 = vmatpush1.msra.mxu0 0.0
    %2508 = vmatprep.subr.mxu0 0.0
    %2509 = vmatpush1.msra.mxu0 0.0
    %2510 = vmatprep.subr.mxu0 0.0
    %2511 = vmatpush1.msra.mxu0 0.0
    %2512 = vmatprep.subr.mxu0 0.0
    %2513 = vmatpush1.msra.mxu0 0.0
    %2514 = vmatprep.subr.mxu0 0.0
    %2515 = vmatpush1.msra.mxu0 0.0
    %2516 = vmatprep.subr.mxu0 0.0
    %2517 = vmatpush1.msra.mxu0 0.0
    %2518 = vmatprep.subr.mxu0 0.0
    %2519 = vmatpush1.msra.mxu0 0.0
    %2520 = vmatprep.subr.mxu0 0.0
    %2521 = vmatpush1.msra.mxu0 0.0
    %2522 = vmatprep.subr.mxu0 0.0
    %2523 = vmatpush1.msra.mxu0 0.0
    %2524 = vmatprep.subr.mxu0 0.0
    %2525 = vmatpush1.msra.mxu0 0.0
    %2526 = vmatprep.subr.mxu0 0.0
    %2527 = vmatpush1.msra.mxu0 0.0
    %2528 = vmatprep.subr.mxu0 0.0
    %2529 = vmatpush1.msra.mxu0 0.0
    %2530 = vmatprep.subr.mxu0 0.0
    %2531 = vmatpush1.msra.mxu0 0.0
    %2532 = vmatprep.subr.mxu0 0.0
    %2533 = vmatpush1.msra.mxu0 0.0
    %2534 = vmatprep.subr.mxu0 0.0
    %2535 = vmatpush1.msra.mxu0 0.0
    %2536 = vmatprep.subr.mxu0 0.0
    %2537 = vmatpush1.msra.mxu0 0.0
    %2538 = vmatprep.subr.mxu0 0.0
    %2539 = vmatpush1.msra.mxu0 0.0
    %2540 = vmatprep.subr.mxu0 0.0
    %2541 = vmatpush1.msra.mxu0 0.0
    %2542 = vmatprep.subr.mxu0 0.0
    %2543 = vmatpush1.msra.mxu0 0.0
    %2544 = vmatprep.subr.mxu0 0.0
    %2545 = vmatpush1.msra.mxu0 0.0
    %2546 = vmatprep.subr.mxu0 0.0
    %2547 = vmatpush1.msra.mxu0 0.0
    %2548 = vmatprep.mubr.f32.mxu0 0.0
    %2549 = vmatmul.mubr.f32.gmra.mrb[0].mxu0 %v2473
    %v2550 = vpop.f32.mrb[0].mxu0
    %v2551 = vadd.f32 0.0, %v2550
    %v2552 = vpop.f32.mrb[0].mxu0
    %2553 = vmatprep.mubr.f32.mxu0 0.0
    %2554 = vmatmul.mubr.f32.gmra.mrb[0].mxu0 %v2476
    %v2555 = vpop.f32.mrb[0].mxu0
    %v2556 = vadd.f32 0.0, %v2555
    %v2557 = vpop.f32.mrb[0].mxu0
    %2558 = vmatprep.mubr.f32.mxu0 0.0
    %2559 = vmatmul.mubr.f32.gmra.mrb[0].mxu0 %v2479
    %v2560 = vpop.f32.mrb[0].mxu0
    %v2561 = vadd.f32 0.0, %v2560
    %v2562 = vpop.f32.mrb[0].mxu0
    %2563 = vmatprep.mubr.f32.mxu0 0.0
    %2564 = vmatmul.mubr.f32.gmra.mrb[0].mxu0 %v2482
    %v2565 = vpop.f32.mrb[0].mxu0
    %v2566 = vadd.f32 0.0, %v2565
    %v2567 = vpop.f32.mrb[0].mxu0
    %2568 = vdwg.mxu0
    %v2569 = vadd.f32 %v2438, %v2551
    %v2570 = vadd.f32 %v2443, %v2556
    %v2571 = vadd.f32 %v2448, %v2561
    %v2572 = vadd.f32 %v2453, %v2566
    %2577 = vrot.lane.b32.xlu0 %v2569, 64
    %v2578 = vpop.permute.xlu0 %2577
    %2579 = vrot.lane.b32.xlu0 %v2570, 64
    %v2580 = vpop.permute.xlu0 %2579
    %2581 = vrot.lane.b32.xlu0 %v2571, 64
    %v2582 = vpop.permute.xlu0 %2581
    %2583 = vrot.lane.b32.xlu0 %v2572, 64
    %v2584 = vpop.permute.xlu0 %2583
    %v2589 = vadd.f32 %v2016, %v2578
    %v2590 = vadd.f32 %v2017, %v2580
    %v2591 = vadd.f32 %v2018, %v2582
    %v2592 = vadd.f32 %v2019, %v2584
    %v2593 = vtanh.pop %v2589
    %v2594 = vtanh.pop %v2590
    %v2595 = vtanh.pop %v2591
    %v2596 = vtanh.pop %v2592
    %v2597 = vmul.f32 %v2037, %v915
    %v2598 = vmul.f32 %v2039, %v917
    %v2599 = vmul.f32 %v2041, %v919
    %v2600 = vmul.f32 %v2043, %v921
    %v2601 = vsub.f32 1.0, %v2037
    %v2602 = vsub.f32 1.0, %v2039
    %v2603 = vsub.f32 1.0, %v2041
    %v2604 = vsub.f32 1.0, %v2043
    %2609 = vrot.lane.b32.xlu0 %v2593, 96
    %v2610 = vpop.permute.xlu0 %2609
    %2611 = vrot.lane.b32.xlu0 %v2594, 96
    %v2612 = vpop.permute.xlu0 %2611
    %2613 = vrot.lane.b32.xlu0 %v2595, 96
    %v2614 = vpop.permute.xlu0 %2613
    %2615 = vrot.lane.b32.xlu0 %v2596, 96
    %v2616 = vpop.permute.xlu0 %2615
    %v2621 = vmul.f32 %v2601, %v2610
    %v2622 = vmul.f32 %v2602, %v2612
    %v2623 = vmul.f32 %v2603, %v2614
    %v2624 = vmul.f32 %v2604, %v2616
    %v2625 = vadd.f32 %v2597, %v2621
    %v2626 = vadd.f32 %v2598, %v2622
    %v2627 = vadd.f32 %v2599, %v2623
    %v2628 = vadd.f32 %v2600, %v2624
    %v2629 = vld [vmem:[%s3 + $0xc8] sm:$0x1]
    %v2630 = vlaneseq
    %v2631 = vshrl.u32 %v2630, 7
    %v2632 = vsub.s32 0, %v2631
    %v2633 = vrot.slane %v2629, %v2632
    %2635 = vrot.lane.b32.xlu0 %v2633, 32
    %v2636 = vpop.permute.xlu0 %2635
    %v2638 = vmul.f32 %v2625, %v2636
    %v2639 = vmul.f32 %v2626, %v2636
    %v2640 = vmul.f32 %v2627, %v2636
    %v2641 = vmul.f32 %v2628, %v2636
    %2646 = vrot.lane.b32.xlu0 %v2638, 96
    %v2647 = vpop.permute.xlu0 %2646
    %2648 = vrot.lane.b32.xlu0 %v2639, 96
    %v2649 = vpop.permute.xlu0 %2648
    %2650 = vrot.lane.b32.xlu0 %v2640, 96
    %v2651 = vpop.permute.xlu0 %2650
    %2652 = vrot.lane.b32.xlu0 %v2641, 96
    %v2653 = vpop.permute.xlu0 %2652
    %v2658 = vsel %vm39, %v2647, 0.0
    %2659 = vadd.xlane.f32.xlu0 %v2658
    %v2660 = vpop.xlane.xlu0 %2659
    %v2661 = vsel %vm39, %v2649, 0.0
    %2662 = vadd.xlane.f32.xlu0 %v2661
    %v2663 = vpop.xlane.xlu0 %2662
    %v2664 = vsel %vm39, %v2651, 0.0
    %2665 = vadd.xlane.f32.xlu0 %v2664
    %v2666 = vpop.xlane.xlu0 %2665
    %v2667 = vsel %vm39, %v2653, 0.0
    %2668 = vadd.xlane.f32.xlu0 %v2667
    %v2669 = vpop.xlane.xlu0 %2668
    %v2670 = vadd.f32 %v2660, %v2633
    %v2671 = vadd.f32 %v2663, %v2633
    %v2672 = vadd.f32 %v2666, %v2633
    %v2673 = vadd.f32 %v2669, %v2633
    %2674 = vst.msk [vmem:[%s4] sm:$0xff] %vm39, %v1536
    %2675 = vst.msk [vmem:[%s4 + $0x8] sm:$0xff] %vm39, %v1538
    %2676 = vst.msk [vmem:[%s4 + $0x10] sm:$0xff] %vm39, %v1540
    %2677 = vst.msk [vmem:[%s4 + $0x18] sm:$0xff] %vm39, %v1542
    %vm2678 = vcmask 523520
    %2679 = vst.msk [vmem:[%s4] sm:$0xff] %vm2678, %v2625
    %2680 = vst.msk [vmem:[%s4 + $0x8] sm:$0xff] %vm2678, %v2626
    %2681 = vst.msk [vmem:[%s4 + $0x10] sm:$0xff] %vm2678, %v2627
    %2682 = vst.msk [vmem:[%s4 + $0x18] sm:$0xff] %vm2678, %v2628
    %2687 = vrot.lane.b32.xlu0 %v2670, 32
    %v2688 = vpop.permute.xlu0 %2687
    %2689 = vrot.lane.b32.xlu0 %v2671, 32
    %v2690 = vpop.permute.xlu0 %2689
    %2691 = vrot.lane.b32.xlu0 %v2672, 32
    %v2692 = vpop.permute.xlu0 %2691
    %2693 = vrot.lane.b32.xlu0 %v2673, 32
    %v2694 = vpop.permute.xlu0 %2693
    %vm2699 = vcmask 531968
    %2700 = vst.msk [vmem:[%s4] sm:$0xff] %vm2699, %v2688
    %2701 = vst.msk [vmem:[%s4 + $0x8] sm:$0xff] %vm2699, %v2690
    %2702 = vst.msk [vmem:[%s4 + $0x10] sm:$0xff] %vm2699, %v2692
    %2703 = vst.msk [vmem:[%s4 + $0x18] sm:$0xff] %vm2699, %v2694
    %vm2704 = vcmask 1048072
    %2705 = vst.msk [vmem:[%s4] sm:$0xff] %vm2704, 0.0
    %2706 = vst.msk [vmem:[%s4 + $0x8] sm:$0xff] %vm2704, 0.0
    %2707 = vst.msk [vmem:[%s4 + $0x10] sm:$0xff] %vm2704, 0.0
    %2708 = vst.msk [vmem:[%s4 + $0x18] sm:$0xff] %vm2704, 0.0
    // Predicated region
    $region22: #{decoder_model_goal_forward.1} parent=1 // pred_check
      _
    $region23: #{decoder_model_goal_forward.1} parent=1 // pred_check_branch
      %2710 = sbr.rel (0) target = $region25
    $region24: #{decoder_model_goal_forward.1} parent=1 // pred_region
      _
    $region25: #{decoder_model_goal_forward.1} parent=1 // pred_fallthru
      _
    // Predicated region
    $region26: #{decoder_model_goal_forward.1} parent=1 // pred_check
      _
    $region27: #{decoder_model_goal_forward.1} parent=1 // pred_check_branch
      %2712 = sbr.rel (0) target = $region29
    $region28: #{decoder_model_goal_forward.1} parent=1 // pred_region
      _
    $region29: #{decoder_model_goal_forward.1} parent=1 // pred_fallthru
      _
    %2713 = vsyncpa [#allocation3], 1

</llo_original>
